<compile_context>
chip_gen: v7x
topology: tpu7x:2x2x1
jax: 0.10.0
libtpu: 0.0.40
codegen_flags: <defaults>
</compile_context>

<pallas_src>
import functools

import jax
import jax.numpy as jnp
from jax import lax
from jax.experimental import pallas as pl
from jax.experimental.pallas import tpu as pltpu

LANE = 128


def _round_up(x, m):
    return ((x + m - 1) // m) * m


def _pick_tile(dim, candidates):
    for c in candidates:
        if dim % c == 0:
            return c
    return dim


# ---------------------------------------------------------------------------
# activation helpers (static python branch -> traced once)
# ---------------------------------------------------------------------------
def _apply_middle(x, middle_function):
    if middle_function == "sigmoid":
        return 4.0 * jax.nn.sigmoid(x) + 1.0
    elif middle_function == "relu":
        return jnp.maximum(x, 0.0)
    elif middle_function == "tanh":
        return 2.0 * jnp.tanh(x) + 3.0
    return x


def _apply_end(x, end_function):
    if end_function == "sigmoid":
        return 4.0 * jax.nn.sigmoid(x) + 1.0
    elif end_function == "clamp":
        return jnp.clip(x, 1.0, 5.0)
    elif end_function == "tanh":
        return 2.0 * jnp.tanh(x) + 3.0
    return x


# ---------------------------------------------------------------------------
# kernels
# ---------------------------------------------------------------------------
def transform_kernel(h_ref, w_ref, z_ref):
    """z = h @ W  (GCNConv feature transform). Row-tiled; K held whole (small)."""
    if h_ref.shape[-1] == 1:
        # Layer-1 input dim is 1: keep the raw node-id feature in f32 (precision) and
        # do the outer product as a VPU broadcast multiply instead of a K=1 matmul.
        z = h_ref[...].astype(jnp.float32) * w_ref[...].astype(jnp.float32)
    else:
        z = jnp.dot(h_ref[...], w_ref[...], preferred_element_type=jnp.float32)
    z_ref[...] = z.astype(z_ref.dtype)


def propagate_kernel(a_ref, z_ref, b_ref, h_ref, acc_ref):
    """h = relu(A_hat @ z + b): tiled K-reduction with an f32 VMEM accumulator."""
    k = pl.program_id(1)

    @pl.when(k == 0)
    def _():
        acc_ref[...] = jnp.zeros_like(acc_ref)

    acc_ref[...] += jnp.dot(a_ref[...], z_ref[...],
                            preferred_element_type=jnp.float32)

    @pl.when(k == pl.num_programs(1) - 1)
    def _():
        h_ref[...] = jnp.maximum(acc_ref[...] + b_ref[...], 0.0).astype(h_ref.dtype)
    # TODO(synk): nn.Dropout is identity in eval mode; train-time masking not implemented.


def linear_middle_kernel(h_ref, w_ref, b_ref, o_ref, *, middle_function, valid_cols):
    """o = middle_fn(h @ W^T + b); zero padded output columns so they cannot leak into
    the users @ items^T rating matmul (matters when middle_fn(0) != 0, e.g. sigmoid)."""
    y = jnp.dot(h_ref[...], w_ref[...], preferred_element_type=jnp.float32)
    y = y + b_ref[...]
    y = _apply_middle(y, middle_function)
    col = lax.broadcasted_iota(jnp.int32, y.shape, 1)
    y = jnp.where(col < valid_cols, y, 0.0)
    o_ref[...] = y.astype(o_ref.dtype)


def rating_kernel(u_ref, i_ref, o_ref, *, end_function):
    """R = end_fn(users @ items^T): contract on the last dim of both operands so the
    MXU takes the transposed-operand path (no XLU transpose / extra VMEM copy)."""
    r = lax.dot_general(u_ref[...], i_ref[...],
                        dimension_numbers=(((1,), (1,)), ((), ())),
                        preferred_element_type=jnp.float32)
    o_ref[...] = _apply_end(r, end_function)


# ---------------------------------------------------------------------------
# pallas_call wrappers
# ---------------------------------------------------------------------------
def _transform(h, w, *, out_dtype=jnp.bfloat16):
    n, k = h.shape
    hdim = w.shape[1]
    tm = _pick_tile(n, (512, 256, 128))
    return pl.pallas_call(
        transform_kernel,
        out_shape=jax.ShapeDtypeStruct((n, hdim), out_dtype),
        grid=(n // tm,),
        in_specs=[pl.BlockSpec((tm, k), lambda i: (i, 0)),
                  pl.BlockSpec((k, hdim), lambda i: (0, 0))],
        out_specs=pl.BlockSpec((tm, hdim), lambda i: (i, 0)),
        compiler_params=pltpu.CompilerParams(
            dimension_semantics=("parallel",)),
    )(h, w)


def _propagate(a_bf16, z, b, *, out_dtype=jnp.bfloat16):
    n = a_bf16.shape[0]
    hdim = z.shape[1]
    tm = _pick_tile(n, (256, 128))
    tk = _pick_tile(n, (512, 256, 128))   # large K tiles: A_hat streaming is HBM-bound
    cost = pl.CostEstimate(
        flops=2 * n * n * hdim,
        transcendentals=0,
        bytes_accessed=(a_bf16.size * a_bf16.dtype.itemsize
                        + z.size * z.dtype.itemsize * (n // tm)
                        + n * hdim * 2))
    return pl.pallas_call(
        propagate_kernel,
        out_shape=jax.ShapeDtypeStruct((n, hdim), out_dtype),
        grid=(n // tm, n // tk),
        in_specs=[pl.BlockSpec((tm, tk), lambda i, k: (i, k)),
                  pl.BlockSpec((tk, hdim), lambda i, k: (k, 0)),
                  pl.BlockSpec((1, hdim), lambda i, k: (0, 0))],
        out_specs=pl.BlockSpec((tm, hdim), lambda i, k: (i, 0)),
        scratch_shapes=[pltpu.VMEM((tm, hdim), jnp.float32)],
        compiler_params=pltpu.CompilerParams(
            dimension_semantics=("parallel", "arbitrary"),
            vmem_limit_bytes=32 * 1024 * 1024),
        cost_estimate=cost,
    )(a_bf16, z, b)


def _linear_middle(h, w, b, middle_function, valid_cols, *, out_dtype=jnp.bfloat16):
    n, k = h.shape
    hdim = w.shape[1]
    tm = _pick_tile(n, (512, 256, 128))
    kern = functools.partial(linear_middle_kernel,
                             middle_function=middle_function,
                             valid_cols=valid_cols)
    return pl.pallas_call(
        kern,
        out_shape=jax.ShapeDtypeStruct((n, hdim), out_dtype),
        grid=(n // tm,),
        in_specs=[pl.BlockSpec((tm, k), lambda i: (i, 0)),
                  pl.BlockSpec((k, hdim), lambda i: (0, 0)),
                  pl.BlockSpec((1, hdim), lambda i: (0, 0))],
        out_specs=pl.BlockSpec((tm, hdim), lambda i: (i, 0)),
        compiler_params=pltpu.CompilerParams(
            dimension_semantics=("parallel",)),
    )(h, w, b)


def _rating(users_h, items_h, end_function):
    upad, hdim = users_h.shape
    ipad = items_h.shape[0]
    tu = _pick_tile(upad, (256, 128))
    ti = _pick_tile(ipad, (1024, 512, 256, 128))   # large, lane-dense output tiles
    kern = functools.partial(rating_kernel, end_function=end_function)
    cost = pl.CostEstimate(
        flops=2 * upad * ipad * hdim,
        transcendentals=0,
        bytes_accessed=(users_h.size + items_h.size) * 2 + upad * ipad * 4)
    return pl.pallas_call(
        kern,
        out_shape=jax.ShapeDtypeStruct((upad, ipad), jnp.float32),
        grid=(upad // tu, ipad // ti),
        in_specs=[pl.BlockSpec((tu, hdim), lambda i, j: (i, 0)),
                  pl.BlockSpec((ti, hdim), lambda i, j: (j, 0))],
        out_specs=pl.BlockSpec((tu, ti), lambda i, j: (i, j)),
        compiler_params=pltpu.CompilerParams(
            dimension_semantics=("parallel", "parallel"),
            vmem_limit_bytes=32 * 1024 * 1024),
        cost_estimate=cost,
    )(users_h, items_h)


# ---------------------------------------------------------------------------
# glue: normalized adjacency on the padded / tile-aligned node layout
# ---------------------------------------------------------------------------
def build_normalized_adjacency(edge_index, num_users, num_items, u_pad, n_pad):
    """Dense D^{-1/2}(A+I)D^{-1/2} (torch_geometric GCNConv defaults) with users at
    rows [0, U) and items at rows [u_pad, u_pad+I); padded rows/cols stay zero."""
    def remap(idx):
        return jnp.where(idx < num_users, idx, idx - num_users + u_pad)
    src = remap(edge_index[0])
    dst = remap(edge_index[1])
    A = jnp.zeros((n_pad, n_pad), jnp.float32)
    A = A.at[dst, src].add(1.0)                      # message src -> dst
    rows = jnp.arange(n_pad)
    real = (rows < num_users) | ((rows >= u_pad) & (rows < u_pad + num_items))
    A = A + jnp.diag(real.astype(jnp.float32))       # self loops (real nodes only)
    deg = A.sum(axis=1)
    d_inv_sqrt = jnp.where(deg > 0, lax.rsqrt(deg), 0.0)
    return d_inv_sqrt[:, None] * A * d_inv_sqrt[None, :]
    # TODO(synk): for production graph sizes replace this dense A_hat with a
    # scalar-prefetch / DMA-gather SpMM (the rating graph is extremely sparse).


# ---------------------------------------------------------------------------
# full forward
# ---------------------------------------------------------------------------
@functools.partial(jax.jit, static_argnums=(2,),
                   static_argnames=("middle_function", "end_function"))
def movie_recommendation_forward(node_ids, edge_index, num_users, params,
                                 middle_function="relu", end_function="clamp"):
    num_nodes = node_ids.shape[0]
    num_items = num_nodes - num_users
    w1, b1, w2, b2, w3t, b3 = params
    h1_dim, h2_dim, h3_dim = w1.shape[1], w2.shape[1], w3t.shape[1]

    # --- tile-aligned padded layout --------------------------------------
    u_pad = _round_up(num_users, LANE)
    i_pad = _round_up(num_items, LANE)
    n_pad = _round_up(u_pad + i_pad, 256)
    h1p, h2p, h3p = (_round_up(d, LANE) for d in (h1_dim, h2_dim, h3_dim))

    # node-id feature, kept f32 (ids lose precision in bf16)
    ids = node_ids.astype(jnp.float32)
    x = jnp.zeros((n_pad, 1), jnp.float32)
    x = x.at[:num_users, 0].set(ids[:num_users])
    x = x.at[u_pad:u_pad + num_items, 0].set(ids[num_users:])

    def pad2(a, r, c):
        return jnp.pad(a, ((0, r - a.shape[0]), (0, c - a.shape[1])))

    w1p = pad2(w1, 1, h1p)                              # f32 (K=1 broadcast path)
    b1p = pad2(b1, 1, h1p)                              # biases stay f32
    w2p = pad2(w2, h1p, h2p).astype(jnp.bfloat16)
    b2p = pad2(b2, 1, h2p)
    w3p = pad2(w3t, h2p, h3p).astype(jnp.bfloat16)
    b3p = pad2(b3, 1, h3p)

    a_hat = build_normalized_adjacency(edge_index, num_users, num_items,
                                       u_pad, n_pad).astype(jnp.bfloat16)

    # --- GCNConv 1: relu(A_hat @ (x @ W1) + b1) ---------------------------
    z1 = _transform(x, w1p)                             # (n_pad, h1p) bf16
    h1 = _propagate(a_hat, z1, b1p)                     # (n_pad, h1p) bf16
    # --- GCNConv 2 ---------------------------------------------------------
    z2 = _transform(h1, w2p)                            # (n_pad, h2p) bf16
    h2 = _propagate(a_hat, z2, b2p)                     # (n_pad, h2p) bf16
    # --- Linear + middle_function -------------------------------------------
    h3 = _linear_middle(h2, w3p, b3p, middle_function, h3_dim)   # (n_pad, h3p) bf16
    # --- rating matrix: users @ items^T + end_function ----------------------
    users_h = lax.slice(h3, (0, 0), (u_pad, h3p))       # tile-aligned splits
    items_h = lax.slice(h3, (u_pad, 0), (u_pad + i_pad, h3p))
    rating = _rating(users_h, items_h, end_function)    # (u_pad, i_pad) f32, lane-dense
    return rating[:num_users, :num_items]


def init_params(key, hidden_layer_1, hidden_layer_2, hidden_layer_3):
    k1, k2, k3 = jax.random.split(key, 3)
    # GCNConv1: in=1 -> H1
    w1 = jax.random.normal(k1, (1, hidden_layer_1), jnp.float32)
    b1 = jnp.zeros((1, hidden_layer_1), jnp.float32)
    # GCNConv2: H1 -> H2
    w2 = jax.random.normal(k2, (hidden_layer_1, hidden_layer_2), jnp.float32) * (
        1.0 / jnp.sqrt(hidden_layer_1))
    b2 = jnp.zeros((1, hidden_layer_2), jnp.float32)
    # nn.Linear: weight (H3, H2) -> passed pre-transposed as (H2, H3)
    w3t = jax.random.normal(k3, (hidden_layer_2, hidden_layer_3), jnp.float32) * (
        1.0 / jnp.sqrt(hidden_layer_2))
    b3 = jnp.zeros((1, hidden_layer_3), jnp.float32)
    return (w1, b1, w2, b2, w3t, b3)


if __name__ == "__main__":
    # Small bipartite user-item graph: 8 users, 8 items -> 16 nodes.
    num_users = 8
    num_items = 8
    N = num_users + num_items
    H1, H2, H3 = 32, 32, 16

    key = jax.random.PRNGKey(0)
    params = init_params(key, H1, H2, H3)

    # Node "features" are just the concatenated ids, as in the PyTorch forward.
    node_ids = jnp.arange(N, dtype=jnp.int32)

    # Deterministic bipartite edges (each user rates 3 items), both directions.
    users_e = jnp.repeat(jnp.arange(num_users, dtype=jnp.int32), 3)
    items_e = (jnp.concatenate([jnp.arange(num_users, dtype=jnp.int32) * k % num_items
                                for k in (1, 2, 3)]).reshape(3, num_users).T.reshape(-1)
               + num_users)
    edge_index = jnp.concatenate([
        jnp.stack([users_e, items_e], axis=0),
        jnp.stack([items_e, users_e], axis=0),
    ], axis=1)   # (2, 48)

    rating = movie_recommendation_forward(
        node_ids, edge_index, num_users, params,
        middle_function="relu", end_function="clamp")
    rating = jax.block_until_ready(rating)

    assert rating.shape == (num_users, num_items)
    assert bool(jnp.all(jnp.isfinite(rating)))
    assert bool(jnp.all((rating >= 1.0) & (rating <= 5.0)))   # end_function='clamp'
    print("KERNEL_OK")
</pallas_src>

<mosaic_0001>
module attributes {stable_mosaic.version = 11 : i64} {
  func.func private @main(%arg0: i32) attributes {dimension_semantics = [#tpu.dimension_semantics<core_parallel>], iteration_bounds = array<i64: 2>, tpu.core_type = #tpu.core_type<sc_scalar_subcore>, window_params = []} {
    return
  }
}

module attributes {stable_mosaic.version = 11 : i64} {
  func.func private @main(%arg0: i32) attributes {dimension_semantics = [#tpu.dimension_semantics<core_parallel>], iteration_bounds = array<i64: 2>, tpu.core_type = #tpu.core_type<sc_scalar_subcore>, window_params = []} {
    return
  }
}

module attributes {stable_mosaic.version = 11 : i64} {
  func.func @transform_kernel(%arg0: i32, %arg1: memref<256x128xbf16, #tpu.memory_space<vmem>>, %arg2: memref<128x128xbf16, #tpu.memory_space<vmem>>, %arg3: memref<256x128xbf16, #tpu.memory_space<vmem>>) attributes {dimension_semantics = [#tpu.dimension_semantics<parallel>], iteration_bounds = array<i64: 1>, scalar_prefetch = 0 : i64, scratch_operands = 0 : i64, tpu.core_type = #tpu.core_type<tc>, window_params = [{transform_indices = @transform_0, window_bounds = array<i64: 256, 128>}, {pipeline_mode = #tpu.pipeline_mode<synchronous>, transform_indices = @transform_1, window_bounds = array<i64: 128, 128>}, {transform_indices = @transform_2, window_bounds = array<i64: 256, 128>}]} {
    %c0 = arith.constant 0 : index
    %c0_0 = arith.constant 0 : index
    %0 = vector.load %arg1[%c0, %c0_0] : memref<256x128xbf16, #tpu.memory_space<vmem>>, vector<256x128xbf16>
    %c0_1 = arith.constant 0 : index
    %c0_2 = arith.constant 0 : index
    %1 = vector.load %arg2[%c0_1, %c0_2] : memref<128x128xbf16, #tpu.memory_space<vmem>>, vector<128x128xbf16>
    %cst = arith.constant dense<0.000000e+00> : vector<256x128xf32>
    %2 = tpu.matmul %0, %1, %cst {dimension_numbers = #tpu.dot_dimension_numbers<[1], [0], [0], [1], [0, 0, 1, 1], [], []>} : vector<256x128xbf16>, vector<128x128xbf16>, vector<256x128xf32> -> vector<256x128xf32>
    %3 = arith.truncf %2 : vector<256x128xf32> to vector<256x128xbf16>
    %c0_3 = arith.constant 0 : index
    %c0_4 = arith.constant 0 : index
    %4 = vector.load %arg3[%c0_3, %c0_4] : memref<256x128xbf16, #tpu.memory_space<vmem>>, vector<256x128xbf16>
    tpu.vector_store %arg3[%c0_3, %c0_4], %3 {strides = array<i32>} : memref<256x128xbf16, #tpu.memory_space<vmem>>, vector<256x128xbf16>,
    return
  }
  func.func @transform_0(%arg0: i32) -> (i32, i32) {
    %c0_i32 = arith.constant 0 : i32
    %c0_i32_0 = arith.constant 0 : i32
    return %arg0, %c0_i32 : i32, i32
  }
  func.func @transform_1(%arg0: i32) -> (i32, i32) {
    %c0_i32 = arith.constant 0 : i32
    %c0_i32_0 = arith.constant 0 : i32
    %c0_i32_1 = arith.constant 0 : i32
    return %c0_i32, %c0_i32_0 : i32, i32
  }
  func.func @transform_2(%arg0: i32) -> (i32, i32) {
    %c0_i32 = arith.constant 0 : i32
    %c0_i32_0 = arith.constant 0 : i32
    return %arg0, %c0_i32 : i32, i32
  }
}

module attributes {stable_mosaic.version = 11 : i64} {
  func.func @transform_kernel(%arg0: i32, %arg1: memref<256x1xf32, #tpu.memory_space<vmem>>, %arg2: memref<1x128xf32, #tpu.memory_space<vmem>>, %arg3: memref<256x128xbf16, #tpu.memory_space<vmem>>) attributes {dimension_semantics = [#tpu.dimension_semantics<parallel>], iteration_bounds = array<i64: 1>, scalar_prefetch = 0 : i64, scratch_operands = 0 : i64, tpu.core_type = #tpu.core_type<tc>, window_params = [{transform_indices = @transform_0, window_bounds = array<i64: 256, 1>}, {pipeline_mode = #tpu.pipeline_mode<synchronous>, transform_indices = @transform_1, window_bounds = array<i64: 1, 128>}, {transform_indices = @transform_2, window_bounds = array<i64: 256, 128>}]} {
    %c0 = arith.constant 0 : index
    %c0_0 = arith.constant 0 : index
    %0 = vector.load %arg1[%c0, %c0_0] : memref<256x1xf32, #tpu.memory_space<vmem>>, vector<256x1xf32>
    %c0_1 = arith.constant 0 : index
    %c0_2 = arith.constant 0 : index
    %1 = vector.load %arg2[%c0_1, %c0_2] : memref<1x128xf32, #tpu.memory_space<vmem>>, vector<1x128xf32>
    %2 = vector.broadcast %0 : vector<256x1xf32> to vector<256x128xf32>
    %3 = vector.broadcast %1 : vector<1x128xf32> to vector<256x128xf32>
    %4 = arith.mulf %2, %3 : vector<256x128xf32>
    %5 = arith.truncf %4 : vector<256x128xf32> to vector<256x128xbf16>
    %c0_3 = arith.constant 0 : index
    %c0_4 = arith.constant 0 : index
    %6 = vector.load %arg3[%c0_3, %c0_4] : memref<256x128xbf16, #tpu.memory_space<vmem>>, vector<256x128xbf16>
    tpu.vector_store %arg3[%c0_3, %c0_4], %5 {strides = array<i32>} : memref<256x128xbf16, #tpu.memory_space<vmem>>, vector<256x128xbf16>,
    return
  }
  func.func @transform_0(%arg0: i32) -> (i32, i32) {
    %c0_i32 = arith.constant 0 : i32
    %c0_i32_0 = arith.constant 0 : i32
    return %arg0, %c0_i32 : i32, i32
  }
  func.func @transform_1(%arg0: i32) -> (i32, i32) {
    %c0_i32 = arith.constant 0 : i32
    %c0_i32_0 = arith.constant 0 : i32
    %c0_i32_1 = arith.constant 0 : i32
    return %c0_i32, %c0_i32_0 : i32, i32
  }
  func.func @transform_2(%arg0: i32) -> (i32, i32) {
    %c0_i32 = arith.constant 0 : i32
    %c0_i32_0 = arith.constant 0 : i32
    return %arg0, %c0_i32 : i32, i32
  }
}

module attributes {stable_mosaic.version = 11 : i64} {
  func.func @propagate_kernel(%arg0: i32, %arg1: i32, %arg2: memref<256x256xbf16, #tpu.memory_space<vmem>>, %arg3: memref<256x128xbf16, #tpu.memory_space<vmem>>, %arg4: memref<1x128xf32, #tpu.memory_space<vmem>>, %arg5: memref<256x128xbf16, #tpu.memory_space<vmem>>, %arg6: memref<256x128xf32, #tpu.memory_space<vmem>>) attributes {dimension_semantics = [#tpu.dimension_semantics<parallel>, #tpu.dimension_semantics<arbitrary>], iteration_bounds = array<i64: 1, 1>, scalar_prefetch = 0 : i64, scratch_operands = 1 : i64, tpu.core_type = #tpu.core_type<tc>, window_params = [{transform_indices = @transform_0, window_bounds = array<i64: 256, 256>}, {transform_indices = @transform_1, window_bounds = array<i64: 256, 128>}, {pipeline_mode = #tpu.pipeline_mode<synchronous>, transform_indices = @transform_2, window_bounds = array<i64: 1, 128>}, {transform_indices = @transform_3, window_bounds = array<i64: 256, 128>}]} {
    %c0_i32 = arith.constant 0 : i32
    %0 = arith.cmpi eq, %arg1, %c0_i32 : i32
    %1 = arith.extui %0 : i1 to i32
    %c0_i32_0 = arith.constant 0 : i32
    %2 = arith.cmpi ne, %1, %c0_i32_0 : i32
    scf.if %2 {
      %cst_10 = arith.constant 0.000000e+00 : f32
      %12 = vector.broadcast %cst_10 : f32 to vector<256x128xf32>
      %c0_11 = arith.constant 0 : index
      %c0_12 = arith.constant 0 : index
      %13 = vector.load %arg6[%c0_11, %c0_12] : memref<256x128xf32, #tpu.memory_space<vmem>>, vector<256x128xf32>
      tpu.vector_store %arg6[%c0_11, %c0_12], %12 {strides = array<i32>} : memref<256x128xf32, #tpu.memory_space<vmem>>, vector<256x128xf32>,
    } else {
    }
    %c0 = arith.constant 0 : index
    %c0_1 = arith.constant 0 : index
    %3 = vector.load %arg6[%c0, %c0_1] : memref<256x128xf32, #tpu.memory_space<vmem>>, vector<256x128xf32>
    %c0_2 = arith.constant 0 : index
    %c0_3 = arith.constant 0 : index
    %4 = vector.load %arg2[%c0_2, %c0_3] : memref<256x256xbf16, #tpu.memory_space<vmem>>, vector<256x256xbf16>
    %c0_4 = arith.constant 0 : index
    %c0_5 = arith.constant 0 : index
    %5 = vector.load %arg3[%c0_4, %c0_5] : memref<256x128xbf16, #tpu.memory_space<vmem>>, vector<256x128xbf16>
    %cst = arith.constant dense<0.000000e+00> : vector<256x128xf32>
    %6 = tpu.matmul %4, %5, %cst {dimension_numbers = #tpu.dot_dimension_numbers<[1], [0], [0], [1], [0, 0, 1, 1], [], []>} : vector<256x256xbf16>, vector<256x128xbf16>, vector<256x128xf32> -> vector<256x128xf32>
    %7 = arith.addf %3, %6 : vector<256x128xf32>
    %c0_6 = arith.constant 0 : index
    %c0_7 = arith.constant 0 : index
    %8 = vector.load %arg6[%c0_6, %c0_7] : memref<256x128xf32, #tpu.memory_space<vmem>>, vector<256x128xf32>
    tpu.vector_store %arg6[%c0_6, %c0_7], %7 {strides = array<i32>} : memref<256x128xf32, #tpu.memory_space<vmem>>, vector<256x128xf32>,
    %c0_i32_8 = arith.constant 0 : i32
    %9 = arith.cmpi eq, %arg1, %c0_i32_8 : i32
    %10 = arith.extui %9 : i1 to i32
    %c0_i32_9 = arith.constant 0 : i32
    %11 = arith.cmpi ne, %10, %c0_i32_9 : i32
    scf.if %11 {
      %c0_10 = arith.constant 0 : index
      %c0_11 = arith.constant 0 : index
      %12 = vector.load %arg6[%c0_10, %c0_11] : memref<256x128xf32, #tpu.memory_space<vmem>>, vector<256x128xf32>
      %c0_12 = arith.constant 0 : index
      %c0_13 = arith.constant 0 : index
      %13 = vector.load %arg4[%c0_12, %c0_13] : memref<1x128xf32, #tpu.memory_space<vmem>>, vector<1x128xf32>
      %14 = vector.broadcast %13 : vector<1x128xf32> to vector<256x128xf32>
      %15 = arith.addf %12, %14 : vector<256x128xf32>
      %cst_14 = arith.constant 0.000000e+00 : f32
      %16 = vector.broadcast %cst_14 : f32 to vector<256x128xf32>
      %17 = arith.maximumf %15, %16 : vector<256x128xf32>
      %18 = arith.truncf %17 : vector<256x128xf32> to vector<256x128xbf16>
      %c0_15 = arith.constant 0 : index
      %c0_16 = arith.constant 0 : index
      %19 = vector.load %arg5[%c0_15, %c0_16] : memref<256x128xbf16, #tpu.memory_space<vmem>>, vector<256x128xbf16>
      tpu.vector_store %arg5[%c0_15, %c0_16], %18 {strides = array<i32>} : memref<256x128xbf16, #tpu.memory_space<vmem>>, vector<256x128xbf16>,
    } else {
    }
    return
  }
  func.func @transform_0(%arg0: i32, %arg1: i32) -> (i32, i32) {
    %c0_i32 = arith.constant 0 : i32
    return %arg0, %arg1 : i32, i32
  }
  func.func @transform_1(%arg0: i32, %arg1: i32) -> (i32, i32) {
    %c0_i32 = arith.constant 0 : i32
    %c0_i32_0 = arith.constant 0 : i32
    return %arg1, %c0_i32 : i32, i32
  }
  func.func @transform_2(%arg0: i32, %arg1: i32) -> (i32, i32) {
    %c0_i32 = arith.constant 0 : i32
    %c0_i32_0 = arith.constant 0 : i32
    %c0_i32_1 = arith.constant 0 : i32
    return %c0_i32, %c0_i32_0 : i32, i32
  }
  func.func @transform_3(%arg0: i32, %arg1: i32) -> (i32, i32) {
    %c0_i32 = arith.constant 0 : i32
    %c0_i32_0 = arith.constant 0 : i32
    return %arg0, %c0_i32 : i32, i32
  }
}

module attributes {stable_mosaic.version = 11 : i64} {
  func.func @linear_middle_kernel(%arg0: i32, %arg1: memref<256x128xbf16, #tpu.memory_space<vmem>>, %arg2: memref<128x128xbf16, #tpu.memory_space<vmem>>, %arg3: memref<1x128xf32, #tpu.memory_space<vmem>>, %arg4: memref<256x128xbf16, #tpu.memory_space<vmem>>) attributes {dimension_semantics = [#tpu.dimension_semantics<parallel>], iteration_bounds = array<i64: 1>, scalar_prefetch = 0 : i64, scratch_operands = 0 : i64, tpu.core_type = #tpu.core_type<tc>, window_params = [{transform_indices = @transform_0, window_bounds = array<i64: 256, 128>}, {pipeline_mode = #tpu.pipeline_mode<synchronous>, transform_indices = @transform_1, window_bounds = array<i64: 128, 128>}, {pipeline_mode = #tpu.pipeline_mode<synchronous>, transform_indices = @transform_2, window_bounds = array<i64: 1, 128>}, {transform_indices = @transform_3, window_bounds = array<i64: 256, 128>}]} {
    %c0 = arith.constant 0 : index
    %c0_0 = arith.constant 0 : index
    %0 = vector.load %arg1[%c0, %c0_0] : memref<256x128xbf16, #tpu.memory_space<vmem>>, vector<256x128xbf16>
    %c0_1 = arith.constant 0 : index
    %c0_2 = arith.constant 0 : index
    %1 = vector.load %arg2[%c0_1, %c0_2] : memref<128x128xbf16, #tpu.memory_space<vmem>>, vector<128x128xbf16>
    %cst = arith.constant dense<0.000000e+00> : vector<256x128xf32>
    %2 = tpu.matmul %0, %1, %cst {dimension_numbers = #tpu.dot_dimension_numbers<[1], [0], [0], [1], [0, 0, 1, 1], [], []>} : vector<256x128xbf16>, vector<128x128xbf16>, vector<256x128xf32> -> vector<256x128xf32>
    %c0_3 = arith.constant 0 : index
    %c0_4 = arith.constant 0 : index
    %3 = vector.load %arg3[%c0_3, %c0_4] : memref<1x128xf32, #tpu.memory_space<vmem>>, vector<1x128xf32>
    %4 = vector.broadcast %3 : vector<1x128xf32> to vector<256x128xf32>
    %5 = arith.addf %2, %4 : vector<256x128xf32>
    %cst_5 = arith.constant 0.000000e+00 : f32
    %6 = vector.broadcast %cst_5 : f32 to vector<256x128xf32>
    %7 = arith.maximumf %5, %6 : vector<256x128xf32>
    %8 = tpu.iota {dimensions = array<i32: 1>} : vector<256x128xi32>
    %c16_i32 = arith.constant 16 : i32
    %9 = vector.broadcast %c16_i32 : i32 to vector<256x128xi32>
    %10 = arith.cmpi slt, %8, %9 : vector<256x128xi32>
    %cst_6 = arith.constant 0.000000e+00 : f32
    %11 = vector.broadcast %cst_6 : f32 to vector<256x128xf32>
    %12 = arith.select %10, %7, %11 : vector<256x128xi1>, vector<256x128xf32>
    %13 = arith.truncf %12 : vector<256x128xf32> to vector<256x128xbf16>
    %c0_7 = arith.constant 0 : index
    %c0_8 = arith.constant 0 : index
    %14 = vector.load %arg4[%c0_7, %c0_8] : memref<256x128xbf16, #tpu.memory_space<vmem>>, vector<256x128xbf16>
    tpu.vector_store %arg4[%c0_7, %c0_8], %13 {strides = array<i32>} : memref<256x128xbf16, #tpu.memory_space<vmem>>, vector<256x128xbf16>,
    return
  }
  func.func @transform_0(%arg0: i32) -> (i32, i32) {
    %c0_i32 = arith.constant 0 : i32
    %c0_i32_0 = arith.constant 0 : i32
    return %arg0, %c0_i32 : i32, i32
  }
  func.func @transform_1(%arg0: i32) -> (i32, i32) {
    %c0_i32 = arith.constant 0 : i32
    %c0_i32_0 = arith.constant 0 : i32
    %c0_i32_1 = arith.constant 0 : i32
    return %c0_i32, %c0_i32_0 : i32, i32
  }
  func.func @transform_2(%arg0: i32) -> (i32, i32) {
    %c0_i32 = arith.constant 0 : i32
    %c0_i32_0 = arith.constant 0 : i32
    %c0_i32_1 = arith.constant 0 : i32
    return %c0_i32, %c0_i32_0 : i32, i32
  }
  func.func @transform_3(%arg0: i32) -> (i32, i32) {
    %c0_i32 = arith.constant 0 : i32
    %c0_i32_0 = arith.constant 0 : i32
    return %arg0, %c0_i32 : i32, i32
  }
}

module attributes {stable_mosaic.version = 11 : i64} {
  func.func @rating_kernel(%arg0: i32, %arg1: i32, %arg2: memref<128x128xbf16, #tpu.memory_space<vmem>>, %arg3: memref<128x128xbf16, #tpu.memory_space<vmem>>, %arg4: memref<128x128xf32, #tpu.memory_space<vmem>>) attributes {dimension_semantics = [#tpu.dimension_semantics<parallel>, #tpu.dimension_semantics<parallel>], iteration_bounds = array<i64: 1, 1>, scalar_prefetch = 0 : i64, scratch_operands = 0 : i64, tpu.core_type = #tpu.core_type<tc>, window_params = [{transform_indices = @transform_0, window_bounds = array<i64: 128, 128>}, {transform_indices = @transform_1, window_bounds = array<i64: 128, 128>}, {transform_indices = @transform_2, window_bounds = array<i64: 128, 128>}]} {
    %c0 = arith.constant 0 : index
    %c0_0 = arith.constant 0 : index
    %0 = vector.load %arg2[%c0, %c0_0] : memref<128x128xbf16, #tpu.memory_space<vmem>>, vector<128x128xbf16>
    %c0_1 = arith.constant 0 : index
    %c0_2 = arith.constant 0 : index
    %1 = vector.load %arg3[%c0_1, %c0_2] : memref<128x128xbf16, #tpu.memory_space<vmem>>, vector<128x128xbf16>
    %cst = arith.constant dense<0.000000e+00> : vector<128x128xf32>
    %2 = tpu.matmul %0, %1, %cst {dimension_numbers = #tpu.dot_dimension_numbers<[1], [1], [0], [0], [0, 0, 1, 0], [], []>} : vector<128x128xbf16>, vector<128x128xbf16>, vector<128x128xf32> -> vector<128x128xf32>
    %cst_3 = arith.constant 1.000000e+00 : f32
    %cst_4 = arith.constant 5.000000e+00 : f32
    %3 = vector.broadcast %cst_3 : f32 to vector<128x128xf32>
    %4 = arith.maximumf %3, %2 : vector<128x128xf32>
    %5 = vector.broadcast %cst_4 : f32 to vector<128x128xf32>
    %6 = arith.minimumf %5, %4 : vector<128x128xf32>
    %c0_5 = arith.constant 0 : index
    %c0_6 = arith.constant 0 : index
    %7 = vector.load %arg4[%c0_5, %c0_6] : memref<128x128xf32, #tpu.memory_space<vmem>>, vector<128x128xf32>
    tpu.vector_store %arg4[%c0_5, %c0_6], %6 {strides = array<i32>} : memref<128x128xf32, #tpu.memory_space<vmem>>, vector<128x128xf32>,
    return
  }
  func.func @transform_0(%arg0: i32, %arg1: i32) -> (i32, i32) {
    %c0_i32 = arith.constant 0 : i32
    %c0_i32_0 = arith.constant 0 : i32
    return %arg0, %c0_i32 : i32, i32
  }
  func.func @transform_1(%arg0: i32, %arg1: i32) -> (i32, i32) {
    %c0_i32 = arith.constant 0 : i32
    %c0_i32_0 = arith.constant 0 : i32
    return %arg1, %c0_i32 : i32, i32
  }
  func.func @transform_2(%arg0: i32, %arg1: i32) -> (i32, i32) {
    %c0_i32 = arith.constant 0 : i32
    return %arg0, %arg1 : i32, i32
  }
}

</mosaic_0001>

<llo_original>
// kernel: movie_recommendation_forward.8
$region0: #{movie_recommendation_forward.8}
  #allocation0 [shape = 'u32[]', space=smem, size = 0x4, offset = 0x4, fixed_abs, tag = 'smem constant byte address 0x4 - core index']
  #allocation1 [shape = 'u32[144,128]{1,0:T(1,128)}', space=vmem, size = 0x12000, scoped, tag = 'internal scratch']
  %s0 = inlined_call_operand.vmem [shape: bf16[256,128], index: 0, kind: input, shape index: {}]
  %s1 = inlined_call_operand.vmem [shape: bf16[128,128], index: 1, kind: input, shape index: {}]
  %s2 = inlined_call_operand.vmem [shape: bf16[256,128], index: 2, kind: output, shape index: {}]
  %s3 = sld [smem:[#allocation0]]
  $region18: #{movie_recommendation_forward.8} parent=0
    _
  %s5 = ssub.s32 1, %s3
  %s6 = scalar_select 0, %s5, %s3
  // Predicated region
  $region2: #{movie_recommendation_forward.8} parent=0 // pred_check
    _
  $region3: #{movie_recommendation_forward.8} parent=0 // pred_check_branch
    %8 = sbr.rel (0) target = $region5
  $region4: #{movie_recommendation_forward.8} parent=0 // pred_region
    _
  $region5: #{movie_recommendation_forward.8} parent=0 // pred_fallthru
    _
  // Predicated region
  $region6: #{movie_recommendation_forward.8} parent=0 // pred_check
    _
  $region7: #{movie_recommendation_forward.8} parent=0 // pred_check_branch
    %10 = sbr.rel (0) target = $region9
  $region8: #{movie_recommendation_forward.8} parent=0 // pred_region
    _
  $region9: #{movie_recommendation_forward.8} parent=0 // pred_fallthru
    _
  %v12 = vld [vmem:[%s0] sm:$0xf]
  %v13 = vld [vmem:[%s0 + $0x4] sm:$0xf]
  %v14 = vld [vmem:[%s0 + $0x8] sm:$0xf]
  %v15 = vld [vmem:[%s0 + $0xc] sm:$0xf]
  %v16 = vld [vmem:[%s0 + $0x10] sm:$0xf]
  %v17 = vld [vmem:[%s0 + $0x14] sm:$0xf]
  %v18 = vld [vmem:[%s0 + $0x18] sm:$0xf]
  %v19 = vld [vmem:[%s0 + $0x1c] sm:$0xf]
  %v20 = vld [vmem:[%s0 + $0x20] sm:$0xf]
  %v21 = vld [vmem:[%s0 + $0x24] sm:$0xf]
  %v22 = vld [vmem:[%s0 + $0x28] sm:$0xf]
  %v23 = vld [vmem:[%s0 + $0x2c] sm:$0xf]
  %v24 = vld [vmem:[%s0 + $0x30] sm:$0xf]
  %v25 = vld [vmem:[%s0 + $0x34] sm:$0xf]
  %v26 = vld [vmem:[%s0 + $0x38] sm:$0xf]
  %v27 = vld [vmem:[%s0 + $0x3c] sm:$0xf]
  %v28 = vld [vmem:[%s0 + $0x40] sm:$0xf]
  %v29 = vld [vmem:[%s0 + $0x44] sm:$0xf]
  %v30 = vld [vmem:[%s0 + $0x48] sm:$0xf]
  %v31 = vld [vmem:[%s0 + $0x4c] sm:$0xf]
  %v32 = vld [vmem:[%s0 + $0x50] sm:$0xf]
  %v33 = vld [vmem:[%s0 + $0x54] sm:$0xf]
  %v34 = vld [vmem:[%s0 + $0x58] sm:$0xf]
  %v35 = vld [vmem:[%s0 + $0x5c] sm:$0xf]
  %v36 = vld [vmem:[%s0 + $0x60] sm:$0xf]
  %v37 = vld [vmem:[%s0 + $0x64] sm:$0xf]
  %v38 = vld [vmem:[%s0 + $0x68] sm:$0xf]
  %v39 = vld [vmem:[%s0 + $0x6c] sm:$0xf]
  %v40 = vld [vmem:[%s0 + $0x70] sm:$0xf]
  %v41 = vld [vmem:[%s0 + $0x74] sm:$0xf]
  %v42 = vld [vmem:[%s0 + $0x78] sm:$0xf]
  %v43 = vld [vmem:[%s0 + $0x7c] sm:$0xf]
  %v44 = vld [vmem:[%s1] sm:$0xf]
  %v45 = vld [vmem:[%s1 + $0x4] sm:$0xf]
  %v46 = vld [vmem:[%s1 + $0x8] sm:$0xf]
  %v47 = vld [vmem:[%s1 + $0xc] sm:$0xf]
  %v48 = vld [vmem:[%s1 + $0x10] sm:$0xf]
  %v49 = vld [vmem:[%s1 + $0x14] sm:$0xf]
  %v50 = vld [vmem:[%s1 + $0x18] sm:$0xf]
  %v51 = vld [vmem:[%s1 + $0x1c] sm:$0xf]
  %v52 = vld [vmem:[%s1 + $0x20] sm:$0xf]
  %v53 = vld [vmem:[%s1 + $0x24] sm:$0xf]
  %v54 = vld [vmem:[%s1 + $0x28] sm:$0xf]
  %v55 = vld [vmem:[%s1 + $0x2c] sm:$0xf]
  %v56 = vld [vmem:[%s1 + $0x30] sm:$0xf]
  %v57 = vld [vmem:[%s1 + $0x34] sm:$0xf]
  %v58 = vld [vmem:[%s1 + $0x38] sm:$0xf]
  %v59 = vld [vmem:[%s1 + $0x3c] sm:$0xf]
  %v92 = vunpack.c.l.b16 %v12
  %v93 = vunpack.c.l.b16 %v13
  %v94 = vunpack.c.l.b16 %v14
  %v95 = vunpack.c.l.b16 %v15
  %v96 = vunpack.c.l.b16 %v16
  %v97 = vunpack.c.l.b16 %v17
  %v98 = vunpack.c.l.b16 %v18
  %v99 = vunpack.c.l.b16 %v19
  %v100 = vunpack.c.l.b16 %v20
  %v101 = vunpack.c.l.b16 %v21
  %v102 = vunpack.c.l.b16 %v22
  %v103 = vunpack.c.l.b16 %v23
  %v104 = vunpack.c.l.b16 %v24
  %v105 = vunpack.c.l.b16 %v25
  %v106 = vunpack.c.l.b16 %v26
  %v107 = vunpack.c.l.b16 %v27
  %v108 = vunpack.c.l.b16 %v28
  %v109 = vunpack.c.l.b16 %v29
  %v110 = vunpack.c.l.b16 %v30
  %v111 = vunpack.c.l.b16 %v31
  %v112 = vunpack.c.l.b16 %v32
  %v113 = vunpack.c.l.b16 %v33
  %v114 = vunpack.c.l.b16 %v34
  %v115 = vunpack.c.l.b16 %v35
  %v116 = vunpack.c.l.b16 %v36
  %v117 = vunpack.c.l.b16 %v37
  %v118 = vunpack.c.l.b16 %v38
  %v119 = vunpack.c.l.b16 %v39
  %v120 = vunpack.c.l.b16 %v40
  %v121 = vunpack.c.l.b16 %v41
  %v122 = vunpack.c.l.b16 %v42
  %v123 = vunpack.c.l.b16 %v43
  %v124 = vpack.c.b16 %v93, %v92
  %v125 = vpack.c.b16 %v95, %v94
  %v126 = vpack.c.b16 %v97, %v96
  %v127 = vpack.c.b16 %v99, %v98
  %v128 = vpack.c.b16 %v101, %v100
  %v129 = vpack.c.b16 %v103, %v102
  %v130 = vpack.c.b16 %v105, %v104
  %v131 = vpack.c.b16 %v107, %v106
  %v132 = vpack.c.b16 %v109, %v108
  %v133 = vpack.c.b16 %v111, %v110
  %v134 = vpack.c.b16 %v113, %v112
  %v135 = vpack.c.b16 %v115, %v114
  %v136 = vpack.c.b16 %v117, %v116
  %v137 = vpack.c.b16 %v119, %v118
  %v138 = vpack.c.b16 %v121, %v120
  %v139 = vpack.c.b16 %v123, %v122
  %v172 = vunpack.c.l.b16 %v44
  %v173 = vunpack.c.l.b16 %v45
  %v174 = vunpack.c.l.b16 %v46
  %v175 = vunpack.c.l.b16 %v47
  %v176 = vunpack.c.l.b16 %v48
  %v177 = vunpack.c.l.b16 %v49
  %v178 = vunpack.c.l.b16 %v50
  %v179 = vunpack.c.l.b16 %v51
  %v180 = vunpack.c.l.b16 %v52
  %v181 = vunpack.c.l.b16 %v53
  %v182 = vunpack.c.l.b16 %v54
  %v183 = vunpack.c.l.b16 %v55
  %v184 = vunpack.c.l.b16 %v56
  %v185 = vunpack.c.l.b16 %v57
  %v186 = vunpack.c.l.b16 %v58
  %v187 = vunpack.c.l.b16 %v59
  %v188 = vpack.c.b16 %v173, %v172
  %v189 = vpack.c.b16 %v175, %v174
  %v190 = vpack.c.b16 %v177, %v176
  %v191 = vpack.c.b16 %v179, %v178
  %v192 = vpack.c.b16 %v181, %v180
  %v193 = vpack.c.b16 %v183, %v182
  %v194 = vpack.c.b16 %v185, %v184
  %v195 = vpack.c.b16 %v187, %v186
  %204 = vmatprep.subr.bf16.mxu0 0
  %205 = vmatpush1.bf16.msra.mxu0 %v188
  %206 = vmatprep.subr.bf16.mxu0 0
  %207 = vmatpush1.bf16.msra.mxu0 %v189
  %208 = vmatprep.subr.bf16.mxu0 0
  %209 = vmatpush1.bf16.msra.mxu0 %v190
  %210 = vmatprep.subr.bf16.mxu0 0
  %211 = vmatpush1.bf16.msra.mxu0 %v191
  %212 = vmatprep.subr.bf16.mxu0 0
  %213 = vmatpush1.bf16.msra.mxu0 %v192
  %214 = vmatprep.subr.bf16.mxu0 0
  %215 = vmatpush1.bf16.msra.mxu0 %v193
  %216 = vmatprep.subr.bf16.mxu0 0
  %217 = vmatpush1.bf16.msra.mxu0 %v194
  %218 = vmatprep.subr.bf16.mxu0 0
  %219 = vmatpush1.bf16.msra.mxu0 %v195
  %220 = vmatprep.subr.bf16.mxu0 0
  %221 = vmatpush1.bf16.msra.mxu0 0
  %222 = vmatprep.subr.bf16.mxu0 0
  %223 = vmatpush1.bf16.msra.mxu0 0
  %224 = vmatprep.subr.bf16.mxu0 0
  %225 = vmatpush1.bf16.msra.mxu0 0
  %226 = vmatprep.subr.bf16.mxu0 0
  %227 = vmatpush1.bf16.msra.mxu0 0
  %228 = vmatprep.subr.bf16.mxu0 0
  %229 = vmatpush1.bf16.msra.mxu0 0
  %230 = vmatprep.subr.bf16.mxu0 0
  %231 = vmatpush1.bf16.msra.mxu0 0
  %232 = vmatprep.subr.bf16.mxu0 0
  %233 = vmatpush1.bf16.msra.mxu0 0
  %234 = vmatprep.subr.bf16.mxu0 0
  %235 = vmatpush1.bf16.msra.mxu0 0
  %236 = vmatprep.mubr.bf16.mxu0 0
  %237 = vmatmul.mubr.bf16.gmra.mrb[0].mxu0 %v124
  %v238 = vpop.f32.mrb[0].mxu0
  %v239 = vadd.f32 0.0, %v238
  %v240 = vpop.f32.mrb[0].mxu0
  %v241 = vpop.f32.mrb[0].mxu0
  %v242 = vadd.f32 0.0, %v241
  %v243 = vpop.f32.mrb[0].mxu0
  %244 = vmatprep.mubr.bf16.mxu0 0
  %245 = vmatmul.mubr.bf16.gmra.mrb[0].mxu0 %v125
  %v246 = vpop.f32.mrb[0].mxu0
  %v247 = vadd.f32 0.0, %v246
  %v248 = vpop.f32.mrb[0].mxu0
  %v249 = vpop.f32.mrb[0].mxu0
  %v250 = vadd.f32 0.0, %v249
  %v251 = vpop.f32.mrb[0].mxu0
  %252 = vmatprep.mubr.bf16.mxu0 0
  %253 = vmatmul.mubr.bf16.gmra.mrb[0].mxu0 %v126
  %v254 = vpop.f32.mrb[0].mxu0
  %v255 = vadd.f32 0.0, %v254
  %v256 = vpop.f32.mrb[0].mxu0
  %v257 = vpop.f32.mrb[0].mxu0
  %v258 = vadd.f32 0.0, %v257
  %v259 = vpop.f32.mrb[0].mxu0
  %260 = vmatprep.mubr.bf16.mxu0 0
  %261 = vmatmul.mubr.bf16.gmra.mrb[0].mxu0 %v127
  %v262 = vpop.f32.mrb[0].mxu0
  %v263 = vadd.f32 0.0, %v262
  %v264 = vpop.f32.mrb[0].mxu0
  %v265 = vpop.f32.mrb[0].mxu0
  %v266 = vadd.f32 0.0, %v265
  %v267 = vpop.f32.mrb[0].mxu0
  %268 = vmatprep.mubr.bf16.mxu0 0
  %269 = vmatmul.mubr.bf16.gmra.mrb[0].mxu0 %v128
  %v270 = vpop.f32.mrb[0].mxu0
  %v271 = vadd.f32 0.0, %v270
  %v272 = vpop.f32.mrb[0].mxu0
  %v273 = vpop.f32.mrb[0].mxu0
  %v274 = vadd.f32 0.0, %v273
  %v275 = vpop.f32.mrb[0].mxu0
  %276 = vmatprep.mubr.bf16.mxu0 0
  %277 = vmatmul.mubr.bf16.gmra.mrb[0].mxu0 %v129
  %v278 = vpop.f32.mrb[0].mxu0
  %v279 = vadd.f32 0.0, %v278
  %v280 = vpop.f32.mrb[0].mxu0
  %v281 = vpop.f32.mrb[0].mxu0
  %v282 = vadd.f32 0.0, %v281
  %v283 = vpop.f32.mrb[0].mxu0
  %284 = vmatprep.mubr.bf16.mxu0 0
  %285 = vmatmul.mubr.bf16.gmra.mrb[0].mxu0 %v130
  %v286 = vpop.f32.mrb[0].mxu0
  %v287 = vadd.f32 0.0, %v286
  %v288 = vpop.f32.mrb[0].mxu0
  %v289 = vpop.f32.mrb[0].mxu0
  %v290 = vadd.f32 0.0, %v289
  %v291 = vpop.f32.mrb[0].mxu0
  %292 = vmatprep.mubr.bf16.mxu0 0
  %293 = vmatmul.mubr.bf16.gmra.mrb[0].mxu0 %v131
  %v294 = vpop.f32.mrb[0].mxu0
  %v295 = vadd.f32 0.0, %v294
  %v296 = vpop.f32.mrb[0].mxu0
  %v297 = vpop.f32.mrb[0].mxu0
  %v298 = vadd.f32 0.0, %v297
  %v299 = vpop.f32.mrb[0].mxu0
  %300 = vmatprep.mubr.bf16.mxu0 0
  %301 = vmatmul.mubr.bf16.gmra.mrb[0].mxu0 %v132
  %v302 = vpop.f32.mrb[0].mxu0
  %v303 = vadd.f32 0.0, %v302
  %v304 = vpop.f32.mrb[0].mxu0
  %v305 = vpop.f32.mrb[0].mxu0
  %v306 = vadd.f32 0.0, %v305
  %v307 = vpop.f32.mrb[0].mxu0
  %308 = vmatprep.mubr.bf16.mxu0 0
  %309 = vmatmul.mubr.bf16.gmra.mrb[0].mxu0 %v133
  %v310 = vpop.f32.mrb[0].mxu0
  %v311 = vadd.f32 0.0, %v310
  %v312 = vpop.f32.mrb[0].mxu0
  %v313 = vpop.f32.mrb[0].mxu0
  %v314 = vadd.f32 0.0, %v313
  %v315 = vpop.f32.mrb[0].mxu0
  %316 = vmatprep.mubr.bf16.mxu0 0
  %317 = vmatmul.mubr.bf16.gmra.mrb[0].mxu0 %v134
  %v318 = vpop.f32.mrb[0].mxu0
  %v319 = vadd.f32 0.0, %v318
  %v320 = vpop.f32.mrb[0].mxu0
  %v321 = vpop.f32.mrb[0].mxu0
  %v322 = vadd.f32 0.0, %v321
  %v323 = vpop.f32.mrb[0].mxu0
  %324 = vmatprep.mubr.bf16.mxu0 0
  %325 = vmatmul.mubr.bf16.gmra.mrb[0].mxu0 %v135
  %v326 = vpop.f32.mrb[0].mxu0
  %v327 = vadd.f32 0.0, %v326
  %v328 = vpop.f32.mrb[0].mxu0
  %v329 = vpop.f32.mrb[0].mxu0
  %v330 = vadd.f32 0.0, %v329
  %v331 = vpop.f32.mrb[0].mxu0
  %332 = vmatprep.mubr.bf16.mxu0 0
  %333 = vmatmul.mubr.bf16.gmra.mrb[0].mxu0 %v136
  %v334 = vpop.f32.mrb[0].mxu0
  %v335 = vadd.f32 0.0, %v334
  %v336 = vpop.f32.mrb[0].mxu0
  %v337 = vpop.f32.mrb[0].mxu0
  %v338 = vadd.f32 0.0, %v337
  %v339 = vpop.f32.mrb[0].mxu0
  %340 = vmatprep.mubr.bf16.mxu0 0
  %341 = vmatmul.mubr.bf16.gmra.mrb[0].mxu0 %v137
  %v342 = vpop.f32.mrb[0].mxu0
  %v343 = vadd.f32 0.0, %v342
  %v344 = vpop.f32.mrb[0].mxu0
  %v345 = vpop.f32.mrb[0].mxu0
  %v346 = vadd.f32 0.0, %v345
  %v347 = vpop.f32.mrb[0].mxu0
  %348 = vmatprep.mubr.bf16.mxu0 0
  %349 = vmatmul.mubr.bf16.gmra.mrb[0].mxu0 %v138
  %v350 = vpop.f32.mrb[0].mxu0
  %v351 = vadd.f32 0.0, %v350
  %v352 = vpop.f32.mrb[0].mxu0
  %v353 = vpop.f32.mrb[0].mxu0
  %v354 = vadd.f32 0.0, %v353
  %v355 = vpop.f32.mrb[0].mxu0
  %356 = vmatprep.mubr.bf16.mxu0 0
  %357 = vmatmul.mubr.bf16.gmra.mrb[0].mxu0 %v139
  %v358 = vpop.f32.mrb[0].mxu0
  %v359 = vadd.f32 0.0, %v358
  %v360 = vpop.f32.mrb[0].mxu0
  %v361 = vpop.f32.mrb[0].mxu0
  %v362 = vadd.f32 0.0, %v361
  %v363 = vpop.f32.mrb[0].mxu0
  %364 = vdwg.mxu0
  %v365 = vpack.c.bf16 %v242, %v239
  %v366 = vpack.c.bf16 %v250, %v247
  %v367 = vpack.c.bf16 %v258, %v255
  %v368 = vpack.c.bf16 %v266, %v263
  %v369 = vpack.c.bf16 %v274, %v271
  %v370 = vpack.c.bf16 %v282, %v279
  %v371 = vpack.c.bf16 %v290, %v287
  %v372 = vpack.c.bf16 %v298, %v295
  %v373 = vpack.c.bf16 %v306, %v303
  %v374 = vpack.c.bf16 %v314, %v311
  %v375 = vpack.c.bf16 %v322, %v319
  %v376 = vpack.c.bf16 %v330, %v327
  %v377 = vpack.c.bf16 %v338, %v335
  %v378 = vpack.c.bf16 %v346, %v343
  %v379 = vpack.c.bf16 %v354, %v351
  %v380 = vpack.c.bf16 %v362, %v359
  %v397 = vunpack.c.l.b16 %v365
  %v398 = vunpack.c.h.b16 %v365
  %v399 = vunpack.c.l.b16 %v366
  %v400 = vunpack.c.h.b16 %v366
  %v401 = vunpack.c.l.b16 %v367
  %v402 = vunpack.c.h.b16 %v367
  %v403 = vunpack.c.l.b16 %v368
  %v404 = vunpack.c.h.b16 %v368
  %v405 = vunpack.c.l.b16 %v369
  %v406 = vunpack.c.h.b16 %v369
  %v407 = vunpack.c.l.b16 %v370
  %v408 = vunpack.c.h.b16 %v370
  %v409 = vunpack.c.l.b16 %v371
  %v410 = vunpack.c.h.b16 %v371
  %v411 = vunpack.c.l.b16 %v372
  %v412 = vunpack.c.h.b16 %v372
  %v413 = vunpack.c.l.b16 %v373
  %v414 = vunpack.c.h.b16 %v373
  %v415 = vunpack.c.l.b16 %v374
  %v416 = vunpack.c.h.b16 %v374
  %v417 = vunpack.c.l.b16 %v375
  %v418 = vunpack.c.h.b16 %v375
  %v419 = vunpack.c.l.b16 %v376
  %v420 = vunpack.c.h.b16 %v376
  %v421 = vunpack.c.l.b16 %v377
  %v422 = vunpack.c.h.b16 %v377
  %v423 = vunpack.c.l.b16 %v378
  %v424 = vunpack.c.h.b16 %v378
  %v425 = vunpack.c.l.b16 %v379
  %v426 = vunpack.c.h.b16 %v379
  %v427 = vunpack.c.l.b16 %v380
  %v428 = vunpack.c.h.b16 %v380
  %v429 = vpack.c.b16 %v397, %v397
  %v430 = vpack.c.b16 %v398, %v398
  %v431 = vpack.c.b16 %v399, %v399
  %v432 = vpack.c.b16 %v400, %v400
  %v433 = vpack.c.b16 %v401, %v401
  %v434 = vpack.c.b16 %v402, %v402
  %v435 = vpack.c.b16 %v403, %v403
  %v436 = vpack.c.b16 %v404, %v404
  %v437 = vpack.c.b16 %v405, %v405
  %v438 = vpack.c.b16 %v406, %v406
  %v439 = vpack.c.b16 %v407, %v407
  %v440 = vpack.c.b16 %v408, %v408
  %v441 = vpack.c.b16 %v409, %v409
  %v442 = vpack.c.b16 %v410, %v410
  %v443 = vpack.c.b16 %v411, %v411
  %v444 = vpack.c.b16 %v412, %v412
  %v445 = vpack.c.b16 %v413, %v413
  %v446 = vpack.c.b16 %v414, %v414
  %v447 = vpack.c.b16 %v415, %v415
  %v448 = vpack.c.b16 %v416, %v416
  %v449 = vpack.c.b16 %v417, %v417
  %v450 = vpack.c.b16 %v418, %v418
  %v451 = vpack.c.b16 %v419, %v419
  %v452 = vpack.c.b16 %v420, %v420
  %v453 = vpack.c.b16 %v421, %v421
  %v454 = vpack.c.b16 %v422, %v422
  %v455 = vpack.c.b16 %v423, %v423
  %v456 = vpack.c.b16 %v424, %v424
  %v457 = vpack.c.b16 %v425, %v425
  %v458 = vpack.c.b16 %v426, %v426
  %v459 = vpack.c.b16 %v427, %v427
  %v460 = vpack.c.b16 %v428, %v428
  %493 = vst [vmem:[%s2] sm:$0xf] %v429
  %494 = vst [vmem:[%s2 + $0x4] sm:$0xf] %v430
  %495 = vst [vmem:[%s2 + $0x8] sm:$0xf] %v431
  %496 = vst [vmem:[%s2 + $0xc] sm:$0xf] %v432
  %497 = vst [vmem:[%s2 + $0x10] sm:$0xf] %v433
  %498 = vst [vmem:[%s2 + $0x14] sm:$0xf] %v434
  %499 = vst [vmem:[%s2 + $0x18] sm:$0xf] %v435
  %500 = vst [vmem:[%s2 + $0x1c] sm:$0xf] %v436
  %501 = vst [vmem:[%s2 + $0x20] sm:$0xf] %v437
  %502 = vst [vmem:[%s2 + $0x24] sm:$0xf] %v438
  %503 = vst [vmem:[%s2 + $0x28] sm:$0xf] %v439
  %504 = vst [vmem:[%s2 + $0x2c] sm:$0xf] %v440
  %505 = vst [vmem:[%s2 + $0x30] sm:$0xf] %v441
  %506 = vst [vmem:[%s2 + $0x34] sm:$0xf] %v442
  %507 = vst [vmem:[%s2 + $0x38] sm:$0xf] %v443
  %508 = vst [vmem:[%s2 + $0x3c] sm:$0xf] %v444
  %509 = vst [vmem:[%s2 + $0x40] sm:$0xf] %v445
  %510 = vst [vmem:[%s2 + $0x44] sm:$0xf] %v446
  %511 = vst [vmem:[%s2 + $0x48] sm:$0xf] %v447
  %512 = vst [vmem:[%s2 + $0x4c] sm:$0xf] %v448
  %513 = vst [vmem:[%s2 + $0x50] sm:$0xf] %v449
  %514 = vst [vmem:[%s2 + $0x54] sm:$0xf] %v450
  %515 = vst [vmem:[%s2 + $0x58] sm:$0xf] %v451
  %516 = vst [vmem:[%s2 + $0x5c] sm:$0xf] %v452
  %517 = vst [vmem:[%s2 + $0x60] sm:$0xf] %v453
  %518 = vst [vmem:[%s2 + $0x64] sm:$0xf] %v454
  %519 = vst [vmem:[%s2 + $0x68] sm:$0xf] %v455
  %520 = vst [vmem:[%s2 + $0x6c] sm:$0xf] %v456
  %521 = vst [vmem:[%s2 + $0x70] sm:$0xf] %v457
  %522 = vst [vmem:[%s2 + $0x74] sm:$0xf] %v458
  %523 = vst [vmem:[%s2 + $0x78] sm:$0xf] %v459
  %524 = vst [vmem:[%s2 + $0x7c] sm:$0xf] %v460
  // Predicated region
  $region10: #{movie_recommendation_forward.8} parent=0 // pred_check
    _
  $region11: #{movie_recommendation_forward.8} parent=0 // pred_check_branch
    %526 = sbr.rel (0) target = $region13
  $region12: #{movie_recommendation_forward.8} parent=0 // pred_region
    _
  $region13: #{movie_recommendation_forward.8} parent=0 // pred_fallthru
    _
  // Predicated region
  $region14: #{movie_recommendation_forward.8} parent=0 // pred_check
    _
  $region15: #{movie_recommendation_forward.8} parent=0 // pred_check_branch
    %528 = sbr.rel (0) target = $region17
  $region16: #{movie_recommendation_forward.8} parent=0 // pred_region
    _
  $region17: #{movie_recommendation_forward.8} parent=0 // pred_fallthru
    _

// kernel: movie_recommendation_forward.6
$region0: #{movie_recommendation_forward.6}
  #allocation0 [shape = 'u32[]', space=smem, size = 0x4, offset = 0x4, fixed_abs, tag = 'smem constant byte address 0x4 - core index']
  #allocation1 [shape = 'u32[144,128]{1,0:T(1,128)}', space=vmem, size = 0x12000, scoped, tag = 'internal scratch']
  %s0 = inlined_call_operand.vmem [shape: f32[256,1], index: 0, kind: input, shape index: {}]
  %s1 = inlined_call_operand.vmem [shape: f32[1,128], index: 1, kind: input, shape index: {}]
  %s2 = inlined_call_operand.vmem [shape: bf16[256,128], index: 2, kind: output, shape index: {}]
  %s3 = sld [smem:[#allocation0]]
  $region18: #{movie_recommendation_forward.6} parent=0
    _
  %s5 = ssub.s32 1, %s3
  %s6 = scalar_select 0, %s5, %s3
  // Predicated region
  $region2: #{movie_recommendation_forward.6} parent=0 // pred_check
    _
  $region3: #{movie_recommendation_forward.6} parent=0 // pred_check_branch
    %8 = sbr.rel (0) target = $region5
  $region4: #{movie_recommendation_forward.6} parent=0 // pred_region
    _
  $region5: #{movie_recommendation_forward.6} parent=0 // pred_fallthru
    _
  // Predicated region
  $region6: #{movie_recommendation_forward.6} parent=0 // pred_check
    _
  $region7: #{movie_recommendation_forward.6} parent=0 // pred_check_branch
    %10 = sbr.rel (0) target = $region9
  $region8: #{movie_recommendation_forward.6} parent=0 // pred_region
    _
  $region9: #{movie_recommendation_forward.6} parent=0 // pred_fallthru
    _
  %v11 = vld [vmem:[%s0] sm:$0xff]
  %v12 = vld [vmem:[%s0 + $0x8] sm:$0xff]
  %v13 = vld [vmem:[%s0 + $0x10] sm:$0xff]
  %v14 = vld [vmem:[%s0 + $0x18] sm:$0xff]
  %v15 = vld [vmem:[%s0 + $0x20] sm:$0xff]
  %v16 = vld [vmem:[%s0 + $0x28] sm:$0xff]
  %v17 = vld [vmem:[%s0 + $0x30] sm:$0xff]
  %v18 = vld [vmem:[%s0 + $0x38] sm:$0xff]
  %v19 = vld [vmem:[%s0 + $0x40] sm:$0xff]
  %v20 = vld [vmem:[%s0 + $0x48] sm:$0xff]
  %v21 = vld [vmem:[%s0 + $0x50] sm:$0xff]
  %v22 = vld [vmem:[%s0 + $0x58] sm:$0xff]
  %v23 = vld [vmem:[%s0 + $0x60] sm:$0xff]
  %v24 = vld [vmem:[%s0 + $0x68] sm:$0xff]
  %v25 = vld [vmem:[%s0 + $0x70] sm:$0xff]
  %v26 = vld [vmem:[%s0 + $0x78] sm:$0xff]
  %v27 = vld [vmem:[%s0 + $0x80] sm:$0xff]
  %v28 = vld [vmem:[%s0 + $0x88] sm:$0xff]
  %v29 = vld [vmem:[%s0 + $0x90] sm:$0xff]
  %v30 = vld [vmem:[%s0 + $0x98] sm:$0xff]
  %v31 = vld [vmem:[%s0 + $0xa0] sm:$0xff]
  %v32 = vld [vmem:[%s0 + $0xa8] sm:$0xff]
  %v33 = vld [vmem:[%s0 + $0xb0] sm:$0xff]
  %v34 = vld [vmem:[%s0 + $0xb8] sm:$0xff]
  %v35 = vld [vmem:[%s0 + $0xc0] sm:$0xff]
  %v36 = vld [vmem:[%s0 + $0xc8] sm:$0xff]
  %v37 = vld [vmem:[%s0 + $0xd0] sm:$0xff]
  %v38 = vld [vmem:[%s0 + $0xd8] sm:$0xff]
  %v39 = vld [vmem:[%s0 + $0xe0] sm:$0xff]
  %v40 = vld [vmem:[%s0 + $0xe8] sm:$0xff]
  %v41 = vld [vmem:[%s0 + $0xf0] sm:$0xff]
  %v42 = vld [vmem:[%s0 + $0xf8] sm:$0xff]
  %v43 = vld [vmem:[%s1] sm:$0x1]
  %45 = vset.pattern.permute.xlu0 0
  %46 = vperm.xlu0 %45, %v11
  %v47 = vpop.permute.xlu0 %46
  %50 = vset.pattern.permute.xlu0 0
  %51 = vperm.xlu0 %50, %v12
  %v52 = vpop.permute.xlu0 %51
  %55 = vset.pattern.permute.xlu0 0
  %56 = vperm.xlu0 %55, %v13
  %v57 = vpop.permute.xlu0 %56
  %60 = vset.pattern.permute.xlu0 0
  %61 = vperm.xlu0 %60, %v14
  %v62 = vpop.permute.xlu0 %61
  %65 = vset.pattern.permute.xlu0 0
  %66 = vperm.xlu0 %65, %v15
  %v67 = vpop.permute.xlu0 %66
  %70 = vset.pattern.permute.xlu0 0
  %71 = vperm.xlu0 %70, %v16
  %v72 = vpop.permute.xlu0 %71
  %75 = vset.pattern.permute.xlu0 0
  %76 = vperm.xlu0 %75, %v17
  %v77 = vpop.permute.xlu0 %76
  %80 = vset.pattern.permute.xlu0 0
  %81 = vperm.xlu0 %80, %v18
  %v82 = vpop.permute.xlu0 %81
  %85 = vset.pattern.permute.xlu0 0
  %86 = vperm.xlu0 %85, %v19
  %v87 = vpop.permute.xlu0 %86
  %90 = vset.pattern.permute.xlu0 0
  %91 = vperm.xlu0 %90, %v20
  %v92 = vpop.permute.xlu0 %91
  %95 = vset.pattern.permute.xlu0 0
  %96 = vperm.xlu0 %95, %v21
  %v97 = vpop.permute.xlu0 %96
  %100 = vset.pattern.permute.xlu0 0
  %101 = vperm.xlu0 %100, %v22
  %v102 = vpop.permute.xlu0 %101
  %105 = vset.pattern.permute.xlu0 0
  %106 = vperm.xlu0 %105, %v23
  %v107 = vpop.permute.xlu0 %106
  %110 = vset.pattern.permute.xlu0 0
  %111 = vperm.xlu0 %110, %v24
  %v112 = vpop.permute.xlu0 %111
  %115 = vset.pattern.permute.xlu0 0
  %116 = vperm.xlu0 %115, %v25
  %v117 = vpop.permute.xlu0 %116
  %120 = vset.pattern.permute.xlu0 0
  %121 = vperm.xlu0 %120, %v26
  %v122 = vpop.permute.xlu0 %121
  %125 = vset.pattern.permute.xlu0 0
  %126 = vperm.xlu0 %125, %v27
  %v127 = vpop.permute.xlu0 %126
  %130 = vset.pattern.permute.xlu0 0
  %131 = vperm.xlu0 %130, %v28
  %v132 = vpop.permute.xlu0 %131
  %135 = vset.pattern.permute.xlu0 0
  %136 = vperm.xlu0 %135, %v29
  %v137 = vpop.permute.xlu0 %136
  %140 = vset.pattern.permute.xlu0 0
  %141 = vperm.xlu0 %140, %v30
  %v142 = vpop.permute.xlu0 %141
  %145 = vset.pattern.permute.xlu0 0
  %146 = vperm.xlu0 %145, %v31
  %v147 = vpop.permute.xlu0 %146
  %150 = vset.pattern.permute.xlu0 0
  %151 = vperm.xlu0 %150, %v32
  %v152 = vpop.permute.xlu0 %151
  %155 = vset.pattern.permute.xlu0 0
  %156 = vperm.xlu0 %155, %v33
  %v157 = vpop.permute.xlu0 %156
  %160 = vset.pattern.permute.xlu0 0
  %161 = vperm.xlu0 %160, %v34
  %v162 = vpop.permute.xlu0 %161
  %165 = vset.pattern.permute.xlu0 0
  %166 = vperm.xlu0 %165, %v35
  %v167 = vpop.permute.xlu0 %166
  %170 = vset.pattern.permute.xlu0 0
  %171 = vperm.xlu0 %170, %v36
  %v172 = vpop.permute.xlu0 %171
  %175 = vset.pattern.permute.xlu0 0
  %176 = vperm.xlu0 %175, %v37
  %v177 = vpop.permute.xlu0 %176
  %180 = vset.pattern.permute.xlu0 0
  %181 = vperm.xlu0 %180, %v38
  %v182 = vpop.permute.xlu0 %181
  %185 = vset.pattern.permute.xlu0 0
  %186 = vperm.xlu0 %185, %v39
  %v187 = vpop.permute.xlu0 %186
  %190 = vset.pattern.permute.xlu0 0
  %191 = vperm.xlu0 %190, %v40
  %v192 = vpop.permute.xlu0 %191
  %195 = vset.pattern.permute.xlu0 0
  %196 = vperm.xlu0 %195, %v41
  %v197 = vpop.permute.xlu0 %196
  %200 = vset.pattern.permute.xlu0 0
  %201 = vperm.xlu0 %200, %v42
  %v202 = vpop.permute.xlu0 %201
  %v205 = vlaneseq
  %v206 = vshrl.u32 %v205, 7
  %v207 = vsub.s32 0, %v206
  %v208 = vrot.slane %v43, %v207
  %v210 = vmul.f32 %v47, %v208
  %v211 = vmul.f32 %v52, %v208
  %v212 = vmul.f32 %v57, %v208
  %v213 = vmul.f32 %v62, %v208
  %v214 = vmul.f32 %v67, %v208
  %v215 = vmul.f32 %v72, %v208
  %v216 = vmul.f32 %v77, %v208
  %v217 = vmul.f32 %v82, %v208
  %v218 = vmul.f32 %v87, %v208
  %v219 = vmul.f32 %v92, %v208
  %v220 = vmul.f32 %v97, %v208
  %v221 = vmul.f32 %v102, %v208
  %v222 = vmul.f32 %v107, %v208
  %v223 = vmul.f32 %v112, %v208
  %v224 = vmul.f32 %v117, %v208
  %v225 = vmul.f32 %v122, %v208
  %v226 = vmul.f32 %v127, %v208
  %v227 = vmul.f32 %v132, %v208
  %v228 = vmul.f32 %v137, %v208
  %v229 = vmul.f32 %v142, %v208
  %v230 = vmul.f32 %v147, %v208
  %v231 = vmul.f32 %v152, %v208
  %v232 = vmul.f32 %v157, %v208
  %v233 = vmul.f32 %v162, %v208
  %v234 = vmul.f32 %v167, %v208
  %v235 = vmul.f32 %v172, %v208
  %v236 = vmul.f32 %v177, %v208
  %v237 = vmul.f32 %v182, %v208
  %v238 = vmul.f32 %v187, %v208
  %v239 = vmul.f32 %v192, %v208
  %v240 = vmul.f32 %v197, %v208
  %v241 = vmul.f32 %v202, %v208
  %v242 = vpack.c.bf16 %v211, %v210
  %v243 = vpack.c.bf16 %v213, %v212
  %v244 = vpack.c.bf16 %v215, %v214
  %v245 = vpack.c.bf16 %v217, %v216
  %v246 = vpack.c.bf16 %v219, %v218
  %v247 = vpack.c.bf16 %v221, %v220
  %v248 = vpack.c.bf16 %v223, %v222
  %v249 = vpack.c.bf16 %v225, %v224
  %v250 = vpack.c.bf16 %v227, %v226
  %v251 = vpack.c.bf16 %v229, %v228
  %v252 = vpack.c.bf16 %v231, %v230
  %v253 = vpack.c.bf16 %v233, %v232
  %v254 = vpack.c.bf16 %v235, %v234
  %v255 = vpack.c.bf16 %v237, %v236
  %v256 = vpack.c.bf16 %v239, %v238
  %v257 = vpack.c.bf16 %v241, %v240
  %v274 = vunpack.c.l.b16 %v242
  %v275 = vunpack.c.h.b16 %v242
  %v276 = vunpack.c.l.b16 %v243
  %v277 = vunpack.c.h.b16 %v243
  %v278 = vunpack.c.l.b16 %v244
  %v279 = vunpack.c.h.b16 %v244
  %v280 = vunpack.c.l.b16 %v245
  %v281 = vunpack.c.h.b16 %v245
  %v282 = vunpack.c.l.b16 %v246
  %v283 = vunpack.c.h.b16 %v246
  %v284 = vunpack.c.l.b16 %v247
  %v285 = vunpack.c.h.b16 %v247
  %v286 = vunpack.c.l.b16 %v248
  %v287 = vunpack.c.h.b16 %v248
  %v288 = vunpack.c.l.b16 %v249
  %v289 = vunpack.c.h.b16 %v249
  %v290 = vunpack.c.l.b16 %v250
  %v291 = vunpack.c.h.b16 %v250
  %v292 = vunpack.c.l.b16 %v251
  %v293 = vunpack.c.h.b16 %v251
  %v294 = vunpack.c.l.b16 %v252
  %v295 = vunpack.c.h.b16 %v252
  %v296 = vunpack.c.l.b16 %v253
  %v297 = vunpack.c.h.b16 %v253
  %v298 = vunpack.c.l.b16 %v254
  %v299 = vunpack.c.h.b16 %v254
  %v300 = vunpack.c.l.b16 %v255
  %v301 = vunpack.c.h.b16 %v255
  %v302 = vunpack.c.l.b16 %v256
  %v303 = vunpack.c.h.b16 %v256
  %v304 = vunpack.c.l.b16 %v257
  %v305 = vunpack.c.h.b16 %v257
  %v306 = vpack.c.b16 %v274, %v274
  %v307 = vpack.c.b16 %v275, %v275
  %v308 = vpack.c.b16 %v276, %v276
  %v309 = vpack.c.b16 %v277, %v277
  %v310 = vpack.c.b16 %v278, %v278
  %v311 = vpack.c.b16 %v279, %v279
  %v312 = vpack.c.b16 %v280, %v280
  %v313 = vpack.c.b16 %v281, %v281
  %v314 = vpack.c.b16 %v282, %v282
  %v315 = vpack.c.b16 %v283, %v283
  %v316 = vpack.c.b16 %v284, %v284
  %v317 = vpack.c.b16 %v285, %v285
  %v318 = vpack.c.b16 %v286, %v286
  %v319 = vpack.c.b16 %v287, %v287
  %v320 = vpack.c.b16 %v288, %v288
  %v321 = vpack.c.b16 %v289, %v289
  %v322 = vpack.c.b16 %v290, %v290
  %v323 = vpack.c.b16 %v291, %v291
  %v324 = vpack.c.b16 %v292, %v292
  %v325 = vpack.c.b16 %v293, %v293
  %v326 = vpack.c.b16 %v294, %v294
  %v327 = vpack.c.b16 %v295, %v295
  %v328 = vpack.c.b16 %v296, %v296
  %v329 = vpack.c.b16 %v297, %v297
  %v330 = vpack.c.b16 %v298, %v298
  %v331 = vpack.c.b16 %v299, %v299
  %v332 = vpack.c.b16 %v300, %v300
  %v333 = vpack.c.b16 %v301, %v301
  %v334 = vpack.c.b16 %v302, %v302
  %v335 = vpack.c.b16 %v303, %v303
  %v336 = vpack.c.b16 %v304, %v304
  %v337 = vpack.c.b16 %v305, %v305
  %370 = vst [vmem:[%s2] sm:$0xf] %v306
  %371 = vst [vmem:[%s2 + $0x4] sm:$0xf] %v307
  %372 = vst [vmem:[%s2 + $0x8] sm:$0xf] %v308
  %373 = vst [vmem:[%s2 + $0xc] sm:$0xf] %v309
  %374 = vst [vmem:[%s2 + $0x10] sm:$0xf] %v310
  %375 = vst [vmem:[%s2 + $0x14] sm:$0xf] %v311
  %376 = vst [vmem:[%s2 + $0x18] sm:$0xf] %v312
  %377 = vst [vmem:[%s2 + $0x1c] sm:$0xf] %v313
  %378 = vst [vmem:[%s2 + $0x20] sm:$0xf] %v314
  %379 = vst [vmem:[%s2 + $0x24] sm:$0xf] %v315
  %380 = vst [vmem:[%s2 + $0x28] sm:$0xf] %v316
  %381 = vst [vmem:[%s2 + $0x2c] sm:$0xf] %v317
  %382 = vst [vmem:[%s2 + $0x30] sm:$0xf] %v318
  %383 = vst [vmem:[%s2 + $0x34] sm:$0xf] %v319
  %384 = vst [vmem:[%s2 + $0x38] sm:$0xf] %v320
  %385 = vst [vmem:[%s2 + $0x3c] sm:$0xf] %v321
  %386 = vst [vmem:[%s2 + $0x40] sm:$0xf] %v322
  %387 = vst [vmem:[%s2 + $0x44] sm:$0xf] %v323
  %388 = vst [vmem:[%s2 + $0x48] sm:$0xf] %v324
  %389 = vst [vmem:[%s2 + $0x4c] sm:$0xf] %v325
  %390 = vst [vmem:[%s2 + $0x50] sm:$0xf] %v326
  %391 = vst [vmem:[%s2 + $0x54] sm:$0xf] %v327
  %392 = vst [vmem:[%s2 + $0x58] sm:$0xf] %v328
  %393 = vst [vmem:[%s2 + $0x5c] sm:$0xf] %v329
  %394 = vst [vmem:[%s2 + $0x60] sm:$0xf] %v330
  %395 = vst [vmem:[%s2 + $0x64] sm:$0xf] %v331
  %396 = vst [vmem:[%s2 + $0x68] sm:$0xf] %v332
  %397 = vst [vmem:[%s2 + $0x6c] sm:$0xf] %v333
  %398 = vst [vmem:[%s2 + $0x70] sm:$0xf] %v334
  %399 = vst [vmem:[%s2 + $0x74] sm:$0xf] %v335
  %400 = vst [vmem:[%s2 + $0x78] sm:$0xf] %v336
  %401 = vst [vmem:[%s2 + $0x7c] sm:$0xf] %v337
  // Predicated region
  $region10: #{movie_recommendation_forward.6} parent=0 // pred_check
    _
  $region11: #{movie_recommendation_forward.6} parent=0 // pred_check_branch
    %403 = sbr.rel (0) target = $region13
  $region12: #{movie_recommendation_forward.6} parent=0 // pred_region
    _
  $region13: #{movie_recommendation_forward.6} parent=0 // pred_fallthru
    _
  // Predicated region
  $region14: #{movie_recommendation_forward.6} parent=0 // pred_check
    _
  $region15: #{movie_recommendation_forward.6} parent=0 // pred_check_branch
    %405 = sbr.rel (0) target = $region17
  $region16: #{movie_recommendation_forward.6} parent=0 // pred_region
    _
  $region17: #{movie_recommendation_forward.6} parent=0 // pred_fallthru
    _

// kernel: movie_recommendation_forward.7
$region0: #{movie_recommendation_forward.7}
  #allocation0 [shape = 'u32[]', space=smem, size = 0x4, offset = 0x4, fixed_abs, tag = 'smem constant byte address 0x4 - core index']
  #allocation1 [shape = 'u32[144,128]{1,0:T(1,128)}', space=vmem, size = 0x12000, scoped, tag = 'internal scratch']
  #allocation2 [shape = 'f32[256,128]{1,0:T(8,128)}', space=vmem, size = 0x20000, scoped, tag = 'scratch operand']
  %s0 = inlined_call_operand.vmem [shape: bf16[256,256], index: 0, kind: input, shape index: {}]
  %s1 = inlined_call_operand.vmem [shape: bf16[256,128], index: 1, kind: input, shape index: {}]
  %s2 = inlined_call_operand.vmem [shape: f32[1,128], index: 2, kind: input, shape index: {}]
  %s3 = inlined_call_operand.vmem [shape: bf16[256,128], index: 3, kind: output, shape index: {}]
  %s4 = sld [smem:[#allocation0]]
  $region30: #{movie_recommendation_forward.7} parent=0
    _
  %s6 = ssub.s32 1, %s4
  %s7 = scalar_select 0, %s6, %s4
  // Predicated region
  $region2: #{movie_recommendation_forward.7} parent=0 // pred_check
    _
  $region3: #{movie_recommendation_forward.7} parent=0 // pred_check_branch
    %9 = sbr.rel (0) target = $region5
  $region4: #{movie_recommendation_forward.7} parent=0 // pred_region
    _
  $region5: #{movie_recommendation_forward.7} parent=0 // pred_fallthru
    _
  // Predicated region
  $region6: #{movie_recommendation_forward.7} parent=0 // pred_check
    _
  $region7: #{movie_recommendation_forward.7} parent=0 // pred_check_branch
    %11 = sbr.rel (0) target = $region9
  $region8: #{movie_recommendation_forward.7} parent=0 // pred_region
    _
  $region9: #{movie_recommendation_forward.7} parent=0 // pred_fallthru
    _
  // Predicated region
  $region10: #{movie_recommendation_forward.7} parent=0 // pred_check
    _
  $region11: #{movie_recommendation_forward.7} parent=0 // pred_check_branch
    %13 = sbr.rel (0) target = $region13
  $region12: #{movie_recommendation_forward.7} parent=0 // pred_region
    _
  $region13: #{movie_recommendation_forward.7} parent=0 // pred_fallthru
    _
  %p15 = scmp.eq.s32.totalorder 0, 0
  // Predicated region
  $region14: #{movie_recommendation_forward.7} parent=0 // pred_check
    %p16 = pneg %p15
  $region15: #{movie_recommendation_forward.7} parent=0 // pred_check_branch
    %18 = sbr.rel (%p16) target = $region17
  $region16: #{movie_recommendation_forward.7} parent=0 // pred_region
    %19 = vst [vmem:[#allocation2] sm:$0xff] 0.0
    %20 = vst [vmem:[#allocation2 + $0x8] sm:$0xff] 0.0
    %21 = vst [vmem:[#allocation2 + $0x10] sm:$0xff] 0.0
    %22 = vst [vmem:[#allocation2 + $0x18] sm:$0xff] 0.0
    %23 = vst [vmem:[#allocation2 + $0x20] sm:$0xff] 0.0
    %24 = vst [vmem:[#allocation2 + $0x28] sm:$0xff] 0.0
    %25 = vst [vmem:[#allocation2 + $0x30] sm:$0xff] 0.0
    %26 = vst [vmem:[#allocation2 + $0x38] sm:$0xff] 0.0
    %27 = vst [vmem:[#allocation2 + $0x40] sm:$0xff] 0.0
    %28 = vst [vmem:[#allocation2 + $0x48] sm:$0xff] 0.0
    %29 = vst [vmem:[#allocation2 + $0x50] sm:$0xff] 0.0
    %30 = vst [vmem:[#allocation2 + $0x58] sm:$0xff] 0.0
    %31 = vst [vmem:[#allocation2 + $0x60] sm:$0xff] 0.0
    %32 = vst [vmem:[#allocation2 + $0x68] sm:$0xff] 0.0
    %33 = vst [vmem:[#allocation2 + $0x70] sm:$0xff] 0.0
    %34 = vst [vmem:[#allocation2 + $0x78] sm:$0xff] 0.0
    %35 = vst [vmem:[#allocation2 + $0x80] sm:$0xff] 0.0
    %36 = vst [vmem:[#allocation2 + $0x88] sm:$0xff] 0.0
    %37 = vst [vmem:[#allocation2 + $0x90] sm:$0xff] 0.0
    %38 = vst [vmem:[#allocation2 + $0x98] sm:$0xff] 0.0
    %39 = vst [vmem:[#allocation2 + $0xa0] sm:$0xff] 0.0
    %40 = vst [vmem:[#allocation2 + $0xa8] sm:$0xff] 0.0
    %41 = vst [vmem:[#allocation2 + $0xb0] sm:$0xff] 0.0
    %42 = vst [vmem:[#allocation2 + $0xb8] sm:$0xff] 0.0
    %43 = vst [vmem:[#allocation2 + $0xc0] sm:$0xff] 0.0
    %44 = vst [vmem:[#allocation2 + $0xc8] sm:$0xff] 0.0
    %45 = vst [vmem:[#allocation2 + $0xd0] sm:$0xff] 0.0
    %46 = vst [vmem:[#allocation2 + $0xd8] sm:$0xff] 0.0
    %47 = vst [vmem:[#allocation2 + $0xe0] sm:$0xff] 0.0
    %48 = vst [vmem:[#allocation2 + $0xe8] sm:$0xff] 0.0
    %49 = vst [vmem:[#allocation2 + $0xf0] sm:$0xff] 0.0
    %50 = vst [vmem:[#allocation2 + $0xf8] sm:$0xff] 0.0
  $region17: #{movie_recommendation_forward.7} parent=0 // pred_fallthru
    _
  %v51 = vld [vmem:[#allocation2] sm:$0xff]
  %v52 = vld [vmem:[#allocation2 + $0x8] sm:$0xff]
  %v53 = vld [vmem:[#allocation2 + $0x10] sm:$0xff]
  %v54 = vld [vmem:[#allocation2 + $0x18] sm:$0xff]
  %v55 = vld [vmem:[#allocation2 + $0x20] sm:$0xff]
  %v56 = vld [vmem:[#allocation2 + $0x28] sm:$0xff]
  %v57 = vld [vmem:[#allocation2 + $0x30] sm:$0xff]
  %v58 = vld [vmem:[#allocation2 + $0x38] sm:$0xff]
  %v59 = vld [vmem:[#allocation2 + $0x40] sm:$0xff]
  %v60 = vld [vmem:[#allocation2 + $0x48] sm:$0xff]
  %v61 = vld [vmem:[#allocation2 + $0x50] sm:$0xff]
  %v62 = vld [vmem:[#allocation2 + $0x58] sm:$0xff]
  %v63 = vld [vmem:[#allocation2 + $0x60] sm:$0xff]
  %v64 = vld [vmem:[#allocation2 + $0x68] sm:$0xff]
  %v65 = vld [vmem:[#allocation2 + $0x70] sm:$0xff]
  %v66 = vld [vmem:[#allocation2 + $0x78] sm:$0xff]
  %v67 = vld [vmem:[#allocation2 + $0x80] sm:$0xff]
  %v68 = vld [vmem:[#allocation2 + $0x88] sm:$0xff]
  %v69 = vld [vmem:[#allocation2 + $0x90] sm:$0xff]
  %v70 = vld [vmem:[#allocation2 + $0x98] sm:$0xff]
  %v71 = vld [vmem:[#allocation2 + $0xa0] sm:$0xff]
  %v72 = vld [vmem:[#allocation2 + $0xa8] sm:$0xff]
  %v73 = vld [vmem:[#allocation2 + $0xb0] sm:$0xff]
  %v74 = vld [vmem:[#allocation2 + $0xb8] sm:$0xff]
  %v75 = vld [vmem:[#allocation2 + $0xc0] sm:$0xff]
  %v76 = vld [vmem:[#allocation2 + $0xc8] sm:$0xff]
  %v77 = vld [vmem:[#allocation2 + $0xd0] sm:$0xff]
  %v78 = vld [vmem:[#allocation2 + $0xd8] sm:$0xff]
  %v79 = vld [vmem:[#allocation2 + $0xe0] sm:$0xff]
  %v80 = vld [vmem:[#allocation2 + $0xe8] sm:$0xff]
  %v81 = vld [vmem:[#allocation2 + $0xf0] sm:$0xff]
  %v82 = vld [vmem:[#allocation2 + $0xf8] sm:$0xff]
  %v83 = vld [vmem:[%s0] sm:$0xff]
  %v84 = vld [vmem:[%s0 + $0x8] sm:$0xff]
  %v85 = vld [vmem:[%s0 + $0x10] sm:$0xff]
  %v86 = vld [vmem:[%s0 + $0x18] sm:$0xff]
  %v87 = vld [vmem:[%s0 + $0x20] sm:$0xff]
  %v88 = vld [vmem:[%s0 + $0x28] sm:$0xff]
  %v89 = vld [vmem:[%s0 + $0x30] sm:$0xff]
  %v90 = vld [vmem:[%s0 + $0x38] sm:$0xff]
  %v91 = vld [vmem:[%s0 + $0x40] sm:$0xff]
  %v92 = vld [vmem:[%s0 + $0x48] sm:$0xff]
  %v93 = vld [vmem:[%s0 + $0x50] sm:$0xff]
  %v94 = vld [vmem:[%s0 + $0x58] sm:$0xff]
  %v95 = vld [vmem:[%s0 + $0x60] sm:$0xff]
  %v96 = vld [vmem:[%s0 + $0x68] sm:$0xff]
  %v97 = vld [vmem:[%s0 + $0x70] sm:$0xff]
  %v98 = vld [vmem:[%s0 + $0x78] sm:$0xff]
  %v99 = vld [vmem:[%s0 + $0x80] sm:$0xff]
  %v100 = vld [vmem:[%s0 + $0x88] sm:$0xff]
  %v101 = vld [vmem:[%s0 + $0x90] sm:$0xff]
  %v102 = vld [vmem:[%s0 + $0x98] sm:$0xff]
  %v103 = vld [vmem:[%s0 + $0xa0] sm:$0xff]
  %v104 = vld [vmem:[%s0 + $0xa8] sm:$0xff]
  %v105 = vld [vmem:[%s0 + $0xb0] sm:$0xff]
  %v106 = vld [vmem:[%s0 + $0xb8] sm:$0xff]
  %v107 = vld [vmem:[%s0 + $0xc0] sm:$0xff]
  %v108 = vld [vmem:[%s0 + $0xc8] sm:$0xff]
  %v109 = vld [vmem:[%s0 + $0xd0] sm:$0xff]
  %v110 = vld [vmem:[%s0 + $0xd8] sm:$0xff]
  %v111 = vld [vmem:[%s0 + $0xe0] sm:$0xff]
  %v112 = vld [vmem:[%s0 + $0xe8] sm:$0xff]
  %v113 = vld [vmem:[%s0 + $0xf0] sm:$0xff]
  %v114 = vld [vmem:[%s0 + $0xf8] sm:$0xff]
  %v115 = vld [vmem:[%s1] sm:$0xf]
  %v116 = vld [vmem:[%s1 + $0x4] sm:$0xf]
  %v117 = vld [vmem:[%s1 + $0x8] sm:$0xf]
  %v118 = vld [vmem:[%s1 + $0xc] sm:$0xf]
  %v119 = vld [vmem:[%s1 + $0x10] sm:$0xf]
  %v120 = vld [vmem:[%s1 + $0x14] sm:$0xf]
  %v121 = vld [vmem:[%s1 + $0x18] sm:$0xf]
  %v122 = vld [vmem:[%s1 + $0x1c] sm:$0xf]
  %v123 = vld [vmem:[%s1 + $0x20] sm:$0xf]
  %v124 = vld [vmem:[%s1 + $0x24] sm:$0xf]
  %v125 = vld [vmem:[%s1 + $0x28] sm:$0xf]
  %v126 = vld [vmem:[%s1 + $0x2c] sm:$0xf]
  %v127 = vld [vmem:[%s1 + $0x30] sm:$0xf]
  %v128 = vld [vmem:[%s1 + $0x34] sm:$0xf]
  %v129 = vld [vmem:[%s1 + $0x38] sm:$0xf]
  %v130 = vld [vmem:[%s1 + $0x3c] sm:$0xf]
  %v131 = vld [vmem:[%s1 + $0x40] sm:$0xf]
  %v132 = vld [vmem:[%s1 + $0x44] sm:$0xf]
  %v133 = vld [vmem:[%s1 + $0x48] sm:$0xf]
  %v134 = vld [vmem:[%s1 + $0x4c] sm:$0xf]
  %v135 = vld [vmem:[%s1 + $0x50] sm:$0xf]
  %v136 = vld [vmem:[%s1 + $0x54] sm:$0xf]
  %v137 = vld [vmem:[%s1 + $0x58] sm:$0xf]
  %v138 = vld [vmem:[%s1 + $0x5c] sm:$0xf]
  %v139 = vld [vmem:[%s1 + $0x60] sm:$0xf]
  %v140 = vld [vmem:[%s1 + $0x64] sm:$0xf]
  %v141 = vld [vmem:[%s1 + $0x68] sm:$0xf]
  %v142 = vld [vmem:[%s1 + $0x6c] sm:$0xf]
  %v143 = vld [vmem:[%s1 + $0x70] sm:$0xf]
  %v144 = vld [vmem:[%s1 + $0x74] sm:$0xf]
  %v145 = vld [vmem:[%s1 + $0x78] sm:$0xf]
  %v146 = vld [vmem:[%s1 + $0x7c] sm:$0xf]
  %v179 = vunpack.c.l.b16 %v83
  %v180 = vunpack.c.h.b16 %v83
  %v181 = vunpack.c.l.b16 %v84
  %v182 = vunpack.c.h.b16 %v84
  %v183 = vunpack.c.l.b16 %v85
  %v184 = vunpack.c.h.b16 %v85
  %v185 = vunpack.c.l.b16 %v86
  %v186 = vunpack.c.h.b16 %v86
  %v187 = vunpack.c.l.b16 %v87
  %v188 = vunpack.c.h.b16 %v87
  %v189 = vunpack.c.l.b16 %v88
  %v190 = vunpack.c.h.b16 %v88
  %v191 = vunpack.c.l.b16 %v89
  %v192 = vunpack.c.h.b16 %v89
  %v193 = vunpack.c.l.b16 %v90
  %v194 = vunpack.c.h.b16 %v90
  %v195 = vunpack.c.l.b16 %v91
  %v196 = vunpack.c.h.b16 %v91
  %v197 = vunpack.c.l.b16 %v92
  %v198 = vunpack.c.h.b16 %v92
  %v199 = vunpack.c.l.b16 %v93
  %v200 = vunpack.c.h.b16 %v93
  %v201 = vunpack.c.l.b16 %v94
  %v202 = vunpack.c.h.b16 %v94
  %v203 = vunpack.c.l.b16 %v95
  %v204 = vunpack.c.h.b16 %v95
  %v205 = vunpack.c.l.b16 %v96
  %v206 = vunpack.c.h.b16 %v96
  %v207 = vunpack.c.l.b16 %v97
  %v208 = vunpack.c.h.b16 %v97
  %v209 = vunpack.c.l.b16 %v98
  %v210 = vunpack.c.h.b16 %v98
  %v211 = vunpack.c.l.b16 %v99
  %v212 = vunpack.c.h.b16 %v99
  %v213 = vunpack.c.l.b16 %v100
  %v214 = vunpack.c.h.b16 %v100
  %v215 = vunpack.c.l.b16 %v101
  %v216 = vunpack.c.h.b16 %v101
  %v217 = vunpack.c.l.b16 %v102
  %v218 = vunpack.c.h.b16 %v102
  %v219 = vunpack.c.l.b16 %v103
  %v220 = vunpack.c.h.b16 %v103
  %v221 = vunpack.c.l.b16 %v104
  %v222 = vunpack.c.h.b16 %v104
  %v223 = vunpack.c.l.b16 %v105
  %v224 = vunpack.c.h.b16 %v105
  %v225 = vunpack.c.l.b16 %v106
  %v226 = vunpack.c.h.b16 %v106
  %v227 = vunpack.c.l.b16 %v107
  %v228 = vunpack.c.h.b16 %v107
  %v229 = vunpack.c.l.b16 %v108
  %v230 = vunpack.c.h.b16 %v108
  %v231 = vunpack.c.l.b16 %v109
  %v232 = vunpack.c.h.b16 %v109
  %v233 = vunpack.c.l.b16 %v110
  %v234 = vunpack.c.h.b16 %v110
  %v235 = vunpack.c.l.b16 %v111
  %v236 = vunpack.c.h.b16 %v111
  %v237 = vunpack.c.l.b16 %v112
  %v238 = vunpack.c.h.b16 %v112
  %v239 = vunpack.c.l.b16 %v113
  %v240 = vunpack.c.h.b16 %v113
  %v241 = vunpack.c.l.b16 %v114
  %v242 = vunpack.c.h.b16 %v114
  %v243 = vpack.c.b16 %v181, %v179
  %v244 = vpack.c.b16 %v182, %v180
  %v245 = vpack.c.b16 %v185, %v183
  %v246 = vpack.c.b16 %v186, %v184
  %v247 = vpack.c.b16 %v189, %v187
  %v248 = vpack.c.b16 %v190, %v188
  %v249 = vpack.c.b16 %v193, %v191
  %v250 = vpack.c.b16 %v194, %v192
  %v251 = vpack.c.b16 %v197, %v195
  %v252 = vpack.c.b16 %v198, %v196
  %v253 = vpack.c.b16 %v201, %v199
  %v254 = vpack.c.b16 %v202, %v200
  %v255 = vpack.c.b16 %v205, %v203
  %v256 = vpack.c.b16 %v206, %v204
  %v257 = vpack.c.b16 %v209, %v207
  %v258 = vpack.c.b16 %v210, %v208
  %v259 = vpack.c.b16 %v213, %v211
  %v260 = vpack.c.b16 %v214, %v212
  %v261 = vpack.c.b16 %v217, %v215
  %v262 = vpack.c.b16 %v218, %v216
  %v263 = vpack.c.b16 %v221, %v219
  %v264 = vpack.c.b16 %v222, %v220
  %v265 = vpack.c.b16 %v225, %v223
  %v266 = vpack.c.b16 %v226, %v224
  %v267 = vpack.c.b16 %v229, %v227
  %v268 = vpack.c.b16 %v230, %v228
  %v269 = vpack.c.b16 %v233, %v231
  %v270 = vpack.c.b16 %v234, %v232
  %v271 = vpack.c.b16 %v237, %v235
  %v272 = vpack.c.b16 %v238, %v236
  %v273 = vpack.c.b16 %v241, %v239
  %v274 = vpack.c.b16 %v242, %v240
  %v339 = vunpack.c.l.b16 %v115
  %v340 = vunpack.c.l.b16 %v116
  %v341 = vunpack.c.l.b16 %v117
  %v342 = vunpack.c.l.b16 %v118
  %v343 = vunpack.c.l.b16 %v119
  %v344 = vunpack.c.l.b16 %v120
  %v345 = vunpack.c.l.b16 %v121
  %v346 = vunpack.c.l.b16 %v122
  %v347 = vunpack.c.l.b16 %v123
  %v348 = vunpack.c.l.b16 %v124
  %v349 = vunpack.c.l.b16 %v125
  %v350 = vunpack.c.l.b16 %v126
  %v351 = vunpack.c.l.b16 %v127
  %v352 = vunpack.c.l.b16 %v128
  %v353 = vunpack.c.l.b16 %v129
  %v354 = vunpack.c.l.b16 %v130
  %v355 = vunpack.c.l.b16 %v131
  %v356 = vunpack.c.l.b16 %v132
  %v357 = vunpack.c.l.b16 %v133
  %v358 = vunpack.c.l.b16 %v134
  %v359 = vunpack.c.l.b16 %v135
  %v360 = vunpack.c.l.b16 %v136
  %v361 = vunpack.c.l.b16 %v137
  %v362 = vunpack.c.l.b16 %v138
  %v363 = vunpack.c.l.b16 %v139
  %v364 = vunpack.c.l.b16 %v140
  %v365 = vunpack.c.l.b16 %v141
  %v366 = vunpack.c.l.b16 %v142
  %v367 = vunpack.c.l.b16 %v143
  %v368 = vunpack.c.l.b16 %v144
  %v369 = vunpack.c.l.b16 %v145
  %v370 = vunpack.c.l.b16 %v146
  %v371 = vpack.c.b16 %v340, %v339
  %v372 = vpack.c.b16 %v342, %v341
  %v373 = vpack.c.b16 %v344, %v343
  %v374 = vpack.c.b16 %v346, %v345
  %v375 = vpack.c.b16 %v348, %v347
  %v376 = vpack.c.b16 %v350, %v349
  %v377 = vpack.c.b16 %v352, %v351
  %v378 = vpack.c.b16 %v354, %v353
  %v379 = vpack.c.b16 %v356, %v355
  %v380 = vpack.c.b16 %v358, %v357
  %v381 = vpack.c.b16 %v360, %v359
  %v382 = vpack.c.b16 %v362, %v361
  %v383 = vpack.c.b16 %v364, %v363
  %v384 = vpack.c.b16 %v366, %v365
  %v385 = vpack.c.b16 %v368, %v367
  %v386 = vpack.c.b16 %v370, %v369
  %403 = vmatprep.subr.bf16.mxu0 0
  %404 = vmatpush1.bf16.msra.mxu0 %v371
  %405 = vmatprep.subr.bf16.mxu0 0
  %406 = vmatpush1.bf16.msra.mxu0 %v372
  %407 = vmatprep.subr.bf16.mxu0 0
  %408 = vmatpush1.bf16.msra.mxu0 %v373
  %409 = vmatprep.subr.bf16.mxu0 0
  %410 = vmatpush1.bf16.msra.mxu0 %v374
  %411 = vmatprep.subr.bf16.mxu0 0
  %412 = vmatpush1.bf16.msra.mxu0 %v375
  %413 = vmatprep.subr.bf16.mxu0 0
  %414 = vmatpush1.bf16.msra.mxu0 %v376
  %415 = vmatprep.subr.bf16.mxu0 0
  %416 = vmatpush1.bf16.msra.mxu0 %v377
  %417 = vmatprep.subr.bf16.mxu0 0
  %418 = vmatpush1.bf16.msra.mxu0 %v378
  %419 = vmatprep.subr.bf16.mxu0 0
  %420 = vmatpush1.bf16.msra.mxu0 %v379
  %421 = vmatprep.subr.bf16.mxu0 0
  %422 = vmatpush1.bf16.msra.mxu0 %v380
  %423 = vmatprep.subr.bf16.mxu0 0
  %424 = vmatpush1.bf16.msra.mxu0 %v381
  %425 = vmatprep.subr.bf16.mxu0 0
  %426 = vmatpush1.bf16.msra.mxu0 %v382
  %427 = vmatprep.subr.bf16.mxu0 0
  %428 = vmatpush1.bf16.msra.mxu0 %v383
  %429 = vmatprep.subr.bf16.mxu0 0
  %430 = vmatpush1.bf16.msra.mxu0 %v384
  %431 = vmatprep.subr.bf16.mxu0 0
  %432 = vmatpush1.bf16.msra.mxu0 %v385
  %433 = vmatprep.subr.bf16.mxu0 0
  %434 = vmatpush1.bf16.msra.mxu0 %v386
  %435 = vmatprep.mubr.bf16.mxu0 %v244
  %436 = vmatmul.mubr.bf16.gmra.mrb[0].mxu0 %v243
  %v437 = vpop.f32.mrb[0].mxu0
  %v438 = vadd.f32 0.0, %v437
  %v439 = vpop.f32.mrb[0].mxu0
  %v440 = vpop.f32.mrb[0].mxu0
  %v441 = vadd.f32 0.0, %v440
  %v442 = vpop.f32.mrb[0].mxu0
  %443 = vmatprep.mubr.bf16.mxu0 %v246
  %444 = vmatmul.mubr.bf16.gmra.mrb[0].mxu0 %v245
  %v445 = vpop.f32.mrb[0].mxu0
  %v446 = vadd.f32 0.0, %v445
  %v447 = vpop.f32.mrb[0].mxu0
  %v448 = vpop.f32.mrb[0].mxu0
  %v449 = vadd.f32 0.0, %v448
  %v450 = vpop.f32.mrb[0].mxu0
  %451 = vmatprep.mubr.bf16.mxu0 %v248
  %452 = vmatmul.mubr.bf16.gmra.mrb[0].mxu0 %v247
  %v453 = vpop.f32.mrb[0].mxu0
  %v454 = vadd.f32 0.0, %v453
  %v455 = vpop.f32.mrb[0].mxu0
  %v456 = vpop.f32.mrb[0].mxu0
  %v457 = vadd.f32 0.0, %v456
  %v458 = vpop.f32.mrb[0].mxu0
  %459 = vmatprep.mubr.bf16.mxu0 %v250
  %460 = vmatmul.mubr.bf16.gmra.mrb[0].mxu0 %v249
  %v461 = vpop.f32.mrb[0].mxu0
  %v462 = vadd.f32 0.0, %v461
  %v463 = vpop.f32.mrb[0].mxu0
  %v464 = vpop.f32.mrb[0].mxu0
  %v465 = vadd.f32 0.0, %v464
  %v466 = vpop.f32.mrb[0].mxu0
  %467 = vmatprep.mubr.bf16.mxu0 %v252
  %468 = vmatmul.mubr.bf16.gmra.mrb[0].mxu0 %v251
  %v469 = vpop.f32.mrb[0].mxu0
  %v470 = vadd.f32 0.0, %v469
  %v471 = vpop.f32.mrb[0].mxu0
  %v472 = vpop.f32.mrb[0].mxu0
  %v473 = vadd.f32 0.0, %v472
  %v474 = vpop.f32.mrb[0].mxu0
  %475 = vmatprep.mubr.bf16.mxu0 %v254
  %476 = vmatmul.mubr.bf16.gmra.mrb[0].mxu0 %v253
  %v477 = vpop.f32.mrb[0].mxu0
  %v478 = vadd.f32 0.0, %v477
  %v479 = vpop.f32.mrb[0].mxu0
  %v480 = vpop.f32.mrb[0].mxu0
  %v481 = vadd.f32 0.0, %v480
  %v482 = vpop.f32.mrb[0].mxu0
  %483 = vmatprep.mubr.bf16.mxu0 %v256
  %484 = vmatmul.mubr.bf16.gmra.mrb[0].mxu0 %v255
  %v485 = vpop.f32.mrb[0].mxu0
  %v486 = vadd.f32 0.0, %v485
  %v487 = vpop.f32.mrb[0].mxu0
  %v488 = vpop.f32.mrb[0].mxu0
  %v489 = vadd.f32 0.0, %v488
  %v490 = vpop.f32.mrb[0].mxu0
  %491 = vmatprep.mubr.bf16.mxu0 %v258
  %492 = vmatmul.mubr.bf16.gmra.mrb[0].mxu0 %v257
  %v493 = vpop.f32.mrb[0].mxu0
  %v494 = vadd.f32 0.0, %v493
  %v495 = vpop.f32.mrb[0].mxu0
  %v496 = vpop.f32.mrb[0].mxu0
  %v497 = vadd.f32 0.0, %v496
  %v498 = vpop.f32.mrb[0].mxu0
  %499 = vmatprep.mubr.bf16.mxu0 %v260
  %500 = vmatmul.mubr.bf16.gmra.mrb[0].mxu0 %v259
  %v501 = vpop.f32.mrb[0].mxu0
  %v502 = vadd.f32 0.0, %v501
  %v503 = vpop.f32.mrb[0].mxu0
  %v504 = vpop.f32.mrb[0].mxu0
  %v505 = vadd.f32 0.0, %v504
  %v506 = vpop.f32.mrb[0].mxu0
  %507 = vmatprep.mubr.bf16.mxu0 %v262
  %508 = vmatmul.mubr.bf16.gmra.mrb[0].mxu0 %v261
  %v509 = vpop.f32.mrb[0].mxu0
  %v510 = vadd.f32 0.0, %v509
  %v511 = vpop.f32.mrb[0].mxu0
  %v512 = vpop.f32.mrb[0].mxu0
  %v513 = vadd.f32 0.0, %v512
  %v514 = vpop.f32.mrb[0].mxu0
  %515 = vmatprep.mubr.bf16.mxu0 %v264
  %516 = vmatmul.mubr.bf16.gmra.mrb[0].mxu0 %v263
  %v517 = vpop.f32.mrb[0].mxu0
  %v518 = vadd.f32 0.0, %v517
  %v519 = vpop.f32.mrb[0].mxu0
  %v520 = vpop.f32.mrb[0].mxu0
  %v521 = vadd.f32 0.0, %v520
  %v522 = vpop.f32.mrb[0].mxu0
  %523 = vmatprep.mubr.bf16.mxu0 %v266
  %524 = vmatmul.mubr.bf16.gmra.mrb[0].mxu0 %v265
  %v525 = vpop.f32.mrb[0].mxu0
  %v526 = vadd.f32 0.0, %v525
  %v527 = vpop.f32.mrb[0].mxu0
  %v528 = vpop.f32.mrb[0].mxu0
  %v529 = vadd.f32 0.0, %v528
  %v530 = vpop.f32.mrb[0].mxu0
  %531 = vmatprep.mubr.bf16.mxu0 %v268
  %532 = vmatmul.mubr.bf16.gmra.mrb[0].mxu0 %v267
  %v533 = vpop.f32.mrb[0].mxu0
  %v534 = vadd.f32 0.0, %v533
  %v535 = vpop.f32.mrb[0].mxu0
  %v536 = vpop.f32.mrb[0].mxu0
  %v537 = vadd.f32 0.0, %v536
  %v538 = vpop.f32.mrb[0].mxu0
  %539 = vmatprep.mubr.bf16.mxu0 %v270
  %540 = vmatmul.mubr.bf16.gmra.mrb[0].mxu0 %v269
  %v541 = vpop.f32.mrb[0].mxu0
  %v542 = vadd.f32 0.0, %v541
  %v543 = vpop.f32.mrb[0].mxu0
  %v544 = vpop.f32.mrb[0].mxu0
  %v545 = vadd.f32 0.0, %v544
  %v546 = vpop.f32.mrb[0].mxu0
  %547 = vmatprep.mubr.bf16.mxu0 %v272
  %548 = vmatmul.mubr.bf16.gmra.mrb[0].mxu0 %v271
  %v549 = vpop.f32.mrb[0].mxu0
  %v550 = vadd.f32 0.0, %v549
  %v551 = vpop.f32.mrb[0].mxu0
  %v552 = vpop.f32.mrb[0].mxu0
  %v553 = vadd.f32 0.0, %v552
  %v554 = vpop.f32.mrb[0].mxu0
  %555 = vmatprep.mubr.bf16.mxu0 %v274
  %556 = vmatmul.mubr.bf16.gmra.mrb[0].mxu0 %v273
  %v557 = vpop.f32.mrb[0].mxu0
  %v558 = vadd.f32 0.0, %v557
  %v559 = vpop.f32.mrb[0].mxu0
  %v560 = vpop.f32.mrb[0].mxu0
  %v561 = vadd.f32 0.0, %v560
  %v562 = vpop.f32.mrb[0].mxu0
  %563 = vdwg.mxu0
  %v564 = vadd.f32 %v51, %v438
  %v565 = vadd.f32 %v52, %v441
  %v566 = vadd.f32 %v53, %v446
  %v567 = vadd.f32 %v54, %v449
  %v568 = vadd.f32 %v55, %v454
  %v569 = vadd.f32 %v56, %v457
  %v570 = vadd.f32 %v57, %v462
  %v571 = vadd.f32 %v58, %v465
  %v572 = vadd.f32 %v59, %v470
  %v573 = vadd.f32 %v60, %v473
  %v574 = vadd.f32 %v61, %v478
  %v575 = vadd.f32 %v62, %v481
  %v576 = vadd.f32 %v63, %v486
  %v577 = vadd.f32 %v64, %v489
  %v578 = vadd.f32 %v65, %v494
  %v579 = vadd.f32 %v66, %v497
  %v580 = vadd.f32 %v67, %v502
  %v581 = vadd.f32 %v68, %v505
  %v582 = vadd.f32 %v69, %v510
  %v583 = vadd.f32 %v70, %v513
  %v584 = vadd.f32 %v71, %v518
  %v585 = vadd.f32 %v72, %v521
  %v586 = vadd.f32 %v73, %v526
  %v587 = vadd.f32 %v74, %v529
  %v588 = vadd.f32 %v75, %v534
  %v589 = vadd.f32 %v76, %v537
  %v590 = vadd.f32 %v77, %v542
  %v591 = vadd.f32 %v78, %v545
  %v592 = vadd.f32 %v79, %v550
  %v593 = vadd.f32 %v80, %v553
  %v594 = vadd.f32 %v81, %v558
  %v595 = vadd.f32 %v82, %v561
  %596 = vst [vmem:[#allocation2] sm:$0xff] %v564
  %597 = vst [vmem:[#allocation2 + $0x8] sm:$0xff] %v565
  %598 = vst [vmem:[#allocation2 + $0x10] sm:$0xff] %v566
  %599 = vst [vmem:[#allocation2 + $0x18] sm:$0xff] %v567
  %600 = vst [vmem:[#allocation2 + $0x20] sm:$0xff] %v568
  %601 = vst [vmem:[#allocation2 + $0x28] sm:$0xff] %v569
  %602 = vst [vmem:[#allocation2 + $0x30] sm:$0xff] %v570
  %603 = vst [vmem:[#allocation2 + $0x38] sm:$0xff] %v571
  %604 = vst [vmem:[#allocation2 + $0x40] sm:$0xff] %v572
  %605 = vst [vmem:[#allocation2 + $0x48] sm:$0xff] %v573
  %606 = vst [vmem:[#allocation2 + $0x50] sm:$0xff] %v574
  %607 = vst [vmem:[#allocation2 + $0x58] sm:$0xff] %v575
  %608 = vst [vmem:[#allocation2 + $0x60] sm:$0xff] %v576
  %609 = vst [vmem:[#allocation2 + $0x68] sm:$0xff] %v577
  %610 = vst [vmem:[#allocation2 + $0x70] sm:$0xff] %v578
  %611 = vst [vmem:[#allocation2 + $0x78] sm:$0xff] %v579
  %612 = vst [vmem:[#allocation2 + $0x80] sm:$0xff] %v580
  %613 = vst [vmem:[#allocation2 + $0x88] sm:$0xff] %v581
  %614 = vst [vmem:[#allocation2 + $0x90] sm:$0xff] %v582
  %615 = vst [vmem:[#allocation2 + $0x98] sm:$0xff] %v583
  %616 = vst [vmem:[#allocation2 + $0xa0] sm:$0xff] %v584
  %617 = vst [vmem:[#allocation2 + $0xa8] sm:$0xff] %v585
  %618 = vst [vmem:[#allocation2 + $0xb0] sm:$0xff] %v586
  %619 = vst [vmem:[#allocation2 + $0xb8] sm:$0xff] %v587
  %620 = vst [vmem:[#allocation2 + $0xc0] sm:$0xff] %v588
  %621 = vst [vmem:[#allocation2 + $0xc8] sm:$0xff] %v589
  %622 = vst [vmem:[#allocation2 + $0xd0] sm:$0xff] %v590
  %623 = vst [vmem:[#allocation2 + $0xd8] sm:$0xff] %v591
  %624 = vst [vmem:[#allocation2 + $0xe0] sm:$0xff] %v592
  %625 = vst [vmem:[#allocation2 + $0xe8] sm:$0xff] %v593
  %626 = vst [vmem:[#allocation2 + $0xf0] sm:$0xff] %v594
  %627 = vst [vmem:[#allocation2 + $0xf8] sm:$0xff] %v595
  // Predicated region
  $region18: #{movie_recommendation_forward.7} parent=0 // pred_check
    %p628 = pneg %p15
  $region19: #{movie_recommendation_forward.7} parent=0 // pred_check_branch
    %630 = sbr.rel (%p628) target = $region21
  $region20: #{movie_recommendation_forward.7} parent=0 // pred_region
    %v631 = vld [vmem:[#allocation2] sm:$0xff]
    %v632 = vld [vmem:[#allocation2 + $0x8] sm:$0xff]
    %v633 = vld [vmem:[#allocation2 + $0x10] sm:$0xff]
    %v634 = vld [vmem:[#allocation2 + $0x18] sm:$0xff]
    %v635 = vld [vmem:[#allocation2 + $0x20] sm:$0xff]
    %v636 = vld [vmem:[#allocation2 + $0x28] sm:$0xff]
    %v637 = vld [vmem:[#allocation2 + $0x30] sm:$0xff]
    %v638 = vld [vmem:[#allocation2 + $0x38] sm:$0xff]
    %v639 = vld [vmem:[#allocation2 + $0x40] sm:$0xff]
    %v640 = vld [vmem:[#allocation2 + $0x48] sm:$0xff]
    %v641 = vld [vmem:[#allocation2 + $0x50] sm:$0xff]
    %v642 = vld [vmem:[#allocation2 + $0x58] sm:$0xff]
    %v643 = vld [vmem:[#allocation2 + $0x60] sm:$0xff]
    %v644 = vld [vmem:[#allocation2 + $0x68] sm:$0xff]
    %v645 = vld [vmem:[#allocation2 + $0x70] sm:$0xff]
    %v646 = vld [vmem:[#allocation2 + $0x78] sm:$0xff]
    %v647 = vld [vmem:[#allocation2 + $0x80] sm:$0xff]
    %v648 = vld [vmem:[#allocation2 + $0x88] sm:$0xff]
    %v649 = vld [vmem:[#allocation2 + $0x90] sm:$0xff]
    %v650 = vld [vmem:[#allocation2 + $0x98] sm:$0xff]
    %v651 = vld [vmem:[#allocation2 + $0xa0] sm:$0xff]
    %v652 = vld [vmem:[#allocation2 + $0xa8] sm:$0xff]
    %v653 = vld [vmem:[#allocation2 + $0xb0] sm:$0xff]
    %v654 = vld [vmem:[#allocation2 + $0xb8] sm:$0xff]
    %v655 = vld [vmem:[#allocation2 + $0xc0] sm:$0xff]
    %v656 = vld [vmem:[#allocation2 + $0xc8] sm:$0xff]
    %v657 = vld [vmem:[#allocation2 + $0xd0] sm:$0xff]
    %v658 = vld [vmem:[#allocation2 + $0xd8] sm:$0xff]
    %v659 = vld [vmem:[#allocation2 + $0xe0] sm:$0xff]
    %v660 = vld [vmem:[#allocation2 + $0xe8] sm:$0xff]
    %v661 = vld [vmem:[#allocation2 + $0xf0] sm:$0xff]
    %v662 = vld [vmem:[#allocation2 + $0xf8] sm:$0xff]
    %v663 = vld [vmem:[%s2] sm:$0x1]
    %v665 = vlaneseq
    %v666 = vshrl.u32 %v665, 7
    %v667 = vsub.s32 0, %v666
    %v668 = vrot.slane %v663, %v667
    %v670 = vadd.f32 %v631, %v668
    %v671 = vadd.f32 %v632, %v668
    %v672 = vadd.f32 %v633, %v668
    %v673 = vadd.f32 %v634, %v668
    %v674 = vadd.f32 %v635, %v668
    %v675 = vadd.f32 %v636, %v668
    %v676 = vadd.f32 %v637, %v668
    %v677 = vadd.f32 %v638, %v668
    %v678 = vadd.f32 %v639, %v668
    %v679 = vadd.f32 %v640, %v668
    %v680 = vadd.f32 %v641, %v668
    %v681 = vadd.f32 %v642, %v668
    %v682 = vadd.f32 %v643, %v668
    %v683 = vadd.f32 %v644, %v668
    %v684 = vadd.f32 %v645, %v668
    %v685 = vadd.f32 %v646, %v668
    %v686 = vadd.f32 %v647, %v668
    %v687 = vadd.f32 %v648, %v668
    %v688 = vadd.f32 %v649, %v668
    %v689 = vadd.f32 %v650, %v668
    %v690 = vadd.f32 %v651, %v668
    %v691 = vadd.f32 %v652, %v668
    %v692 = vadd.f32 %v653, %v668
    %v693 = vadd.f32 %v654, %v668
    %v694 = vadd.f32 %v655, %v668
    %v695 = vadd.f32 %v656, %v668
    %v696 = vadd.f32 %v657, %v668
    %v697 = vadd.f32 %v658, %v668
    %v698 = vadd.f32 %v659, %v668
    %v699 = vadd.f32 %v660, %v668
    %v700 = vadd.f32 %v661, %v668
    %v701 = vadd.f32 %v662, %v668
    %v702 = vmax.f32 %v670, 0.0
    %v703 = vmax.f32 %v671, 0.0
    %v704 = vmax.f32 %v672, 0.0
    %v705 = vmax.f32 %v673, 0.0
    %v706 = vmax.f32 %v674, 0.0
    %v707 = vmax.f32 %v675, 0.0
    %v708 = vmax.f32 %v676, 0.0
    %v709 = vmax.f32 %v677, 0.0
    %v710 = vmax.f32 %v678, 0.0
    %v711 = vmax.f32 %v679, 0.0
    %v712 = vmax.f32 %v680, 0.0
    %v713 = vmax.f32 %v681, 0.0
    %v714 = vmax.f32 %v682, 0.0
    %v715 = vmax.f32 %v683, 0.0
    %v716 = vmax.f32 %v684, 0.0
    %v717 = vmax.f32 %v685, 0.0
    %v718 = vmax.f32 %v686, 0.0
    %v719 = vmax.f32 %v687, 0.0
    %v720 = vmax.f32 %v688, 0.0
    %v721 = vmax.f32 %v689, 0.0
    %v722 = vmax.f32 %v690, 0.0
    %v723 = vmax.f32 %v691, 0.0
    %v724 = vmax.f32 %v692, 0.0
    %v725 = vmax.f32 %v693, 0.0
    %v726 = vmax.f32 %v694, 0.0
    %v727 = vmax.f32 %v695, 0.0
    %v728 = vmax.f32 %v696, 0.0
    %v729 = vmax.f32 %v697, 0.0
    %v730 = vmax.f32 %v698, 0.0
    %v731 = vmax.f32 %v699, 0.0
    %v732 = vmax.f32 %v700, 0.0
    %v733 = vmax.f32 %v701, 0.0
    %v734 = vpack.c.bf16 %v703, %v702
    %v735 = vpack.c.bf16 %v705, %v704
    %v736 = vpack.c.bf16 %v707, %v706
    %v737 = vpack.c.bf16 %v709, %v708
    %v738 = vpack.c.bf16 %v711, %v710
    %v739 = vpack.c.bf16 %v713, %v712
    %v740 = vpack.c.bf16 %v715, %v714
    %v741 = vpack.c.bf16 %v717, %v716
    %v742 = vpack.c.bf16 %v719, %v718
    %v743 = vpack.c.bf16 %v721, %v720
    %v744 = vpack.c.bf16 %v723, %v722
    %v745 = vpack.c.bf16 %v725, %v724
    %v746 = vpack.c.bf16 %v727, %v726
    %v747 = vpack.c.bf16 %v729, %v728
    %v748 = vpack.c.bf16 %v731, %v730
    %v749 = vpack.c.bf16 %v733, %v732
    %v766 = vunpack.c.l.b16 %v734
    %v767 = vunpack.c.h.b16 %v734
    %v768 = vunpack.c.l.b16 %v735
    %v769 = vunpack.c.h.b16 %v735
    %v770 = vunpack.c.l.b16 %v736
    %v771 = vunpack.c.h.b16 %v736
    %v772 = vunpack.c.l.b16 %v737
    %v773 = vunpack.c.h.b16 %v737
    %v774 = vunpack.c.l.b16 %v738
    %v775 = vunpack.c.h.b16 %v738
    %v776 = vunpack.c.l.b16 %v739
    %v777 = vunpack.c.h.b16 %v739
    %v778 = vunpack.c.l.b16 %v740
    %v779 = vunpack.c.h.b16 %v740
    %v780 = vunpack.c.l.b16 %v741
    %v781 = vunpack.c.h.b16 %v741
    %v782 = vunpack.c.l.b16 %v742
    %v783 = vunpack.c.h.b16 %v742
    %v784 = vunpack.c.l.b16 %v743
    %v785 = vunpack.c.h.b16 %v743
    %v786 = vunpack.c.l.b16 %v744
    %v787 = vunpack.c.h.b16 %v744
    %v788 = vunpack.c.l.b16 %v745
    %v789 = vunpack.c.h.b16 %v745
    %v790 = vunpack.c.l.b16 %v746
    %v791 = vunpack.c.h.b16 %v746
    %v792 = vunpack.c.l.b16 %v747
    %v793 = vunpack.c.h.b16 %v747
    %v794 = vunpack.c.l.b16 %v748
    %v795 = vunpack.c.h.b16 %v748
    %v796 = vunpack.c.l.b16 %v749
    %v797 = vunpack.c.h.b16 %v749
    %v798 = vpack.c.b16 %v766, %v766
    %v799 = vpack.c.b16 %v767, %v767
    %v800 = vpack.c.b16 %v768, %v768
    %v801 = vpack.c.b16 %v769, %v769
    %v802 = vpack.c.b16 %v770, %v770
    %v803 = vpack.c.b16 %v771, %v771
    %v804 = vpack.c.b16 %v772, %v772
    %v805 = vpack.c.b16 %v773, %v773
    %v806 = vpack.c.b16 %v774, %v774
    %v807 = vpack.c.b16 %v775, %v775
    %v808 = vpack.c.b16 %v776, %v776
    %v809 = vpack.c.b16 %v777, %v777
    %v810 = vpack.c.b16 %v778, %v778
    %v811 = vpack.c.b16 %v779, %v779
    %v812 = vpack.c.b16 %v780, %v780
    %v813 = vpack.c.b16 %v781, %v781
    %v814 = vpack.c.b16 %v782, %v782
    %v815 = vpack.c.b16 %v783, %v783
    %v816 = vpack.c.b16 %v784, %v784
    %v817 = vpack.c.b16 %v785, %v785
    %v818 = vpack.c.b16 %v786, %v786
    %v819 = vpack.c.b16 %v787, %v787
    %v820 = vpack.c.b16 %v788, %v788
    %v821 = vpack.c.b16 %v789, %v789
    %v822 = vpack.c.b16 %v790, %v790
    %v823 = vpack.c.b16 %v791, %v791
    %v824 = vpack.c.b16 %v792, %v792
    %v825 = vpack.c.b16 %v793, %v793
    %v826 = vpack.c.b16 %v794, %v794
    %v827 = vpack.c.b16 %v795, %v795
    %v828 = vpack.c.b16 %v796, %v796
    %v829 = vpack.c.b16 %v797, %v797
    %862 = vst [vmem:[%s3] sm:$0xf] %v798
    %863 = vst [vmem:[%s3 + $0x4] sm:$0xf] %v799
    %864 = vst [vmem:[%s3 + $0x8] sm:$0xf] %v800
    %865 = vst [vmem:[%s3 + $0xc] sm:$0xf] %v801
    %866 = vst [vmem:[%s3 + $0x10] sm:$0xf] %v802
    %867 = vst [vmem:[%s3 + $0x14] sm:$0xf] %v803
    %868 = vst [vmem:[%s3 + $0x18] sm:$0xf] %v804
    %869 = vst [vmem:[%s3 + $0x1c] sm:$0xf] %v805
    %870 = vst [vmem:[%s3 + $0x20] sm:$0xf] %v806
    %871 = vst [vmem:[%s3 + $0x24] sm:$0xf] %v807
    %872 = vst [vmem:[%s3 + $0x28] sm:$0xf] %v808
    %873 = vst [vmem:[%s3 + $0x2c] sm:$0xf] %v809
    %874 = vst [vmem:[%s3 + $0x30] sm:$0xf] %v810
    %875 = vst [vmem:[%s3 + $0x34] sm:$0xf] %v811
    %876 = vst [vmem:[%s3 + $0x38] sm:$0xf] %v812
    %877 = vst [vmem:[%s3 + $0x3c] sm:$0xf] %v813
    %878 = vst [vmem:[%s3 + $0x40] sm:$0xf] %v814
    %879 = vst [vmem:[%s3 + $0x44] sm:$0xf] %v815
    %880 = vst [vmem:[%s3 + $0x48] sm:$0xf] %v816
    %881 = vst [vmem:[%s3 + $0x4c] sm:$0xf] %v817
    %882 = vst [vmem:[%s3 + $0x50] sm:$0xf] %v818
    %883 = vst [vmem:[%s3 + $0x54] sm:$0xf] %v819
    %884 = vst [vmem:[%s3 + $0x58] sm:$0xf] %v820
    %885 = vst [vmem:[%s3 + $0x5c] sm:$0xf] %v821
    %886 = vst [vmem:[%s3 + $0x60] sm:$0xf] %v822
    %887 = vst [vmem:[%s3 + $0x64] sm:$0xf] %v823
    %888 = vst [vmem:[%s3 + $0x68] sm:$0xf] %v824
    %889 = vst [vmem:[%s3 + $0x6c] sm:$0xf] %v825
    %890 = vst [vmem:[%s3 + $0x70] sm:$0xf] %v826
    %891 = vst [vmem:[%s3 + $0x74] sm:$0xf] %v827
    %892 = vst [vmem:[%s3 + $0x78] sm:$0xf] %v828
    %893 = vst [vmem:[%s3 + $0x7c] sm:$0xf] %v829
  $region21: #{movie_recommendation_forward.7} parent=0 // pred_fallthru
    _
  // Predicated region
  $region22: #{movie_recommendation_forward.7} parent=0 // pred_check
    _
  $region23: #{movie_recommendation_forward.7} parent=0 // pred_check_branch
    %895 = sbr.rel (0) target = $region25
  $region24: #{movie_recommendation_forward.7} parent=0 // pred_region
    _
  $region25: #{movie_recommendation_forward.7} parent=0 // pred_fallthru
    _
  // Predicated region
  $region26: #{movie_recommendation_forward.7} parent=0 // pred_check
    _
  $region27: #{movie_recommendation_forward.7} parent=0 // pred_check_branch
    %897 = sbr.rel (0) target = $region29
  $region28: #{movie_recommendation_forward.7} parent=0 // pred_region
    _
  $region29: #{movie_recommendation_forward.7} parent=0 // pred_fallthru
    _

// kernel: movie_recommendation_forward.10
$region0: #{movie_recommendation_forward.10}
  #allocation0 [shape = 'u32[]', space=smem, size = 0x4, offset = 0x4, fixed_abs, tag = 'smem constant byte address 0x4 - core index']
  #allocation1 [shape = 'u32[144,128]{1,0:T(1,128)}', space=vmem, size = 0x12000, scoped, tag = 'internal scratch']
  %s0 = inlined_call_operand.vmem [shape: bf16[256,128], index: 0, kind: input, shape index: {}]
  %s1 = inlined_call_operand.vmem [shape: bf16[128,128], index: 1, kind: input, shape index: {}]
  %s2 = inlined_call_operand.vmem [shape: f32[1,128], index: 2, kind: input, shape index: {}]
  %s3 = inlined_call_operand.vmem [shape: bf16[256,128], index: 3, kind: output, shape index: {}]
  %s4 = sld [smem:[#allocation0]]
  $region22: #{movie_recommendation_forward.10} parent=0
    _
  %s6 = ssub.s32 1, %s4
  %s7 = scalar_select 0, %s6, %s4
  // Predicated region
  $region2: #{movie_recommendation_forward.10} parent=0 // pred_check
    _
  $region3: #{movie_recommendation_forward.10} parent=0 // pred_check_branch
    %9 = sbr.rel (0) target = $region5
  $region4: #{movie_recommendation_forward.10} parent=0 // pred_region
    _
  $region5: #{movie_recommendation_forward.10} parent=0 // pred_fallthru
    _
  // Predicated region
  $region6: #{movie_recommendation_forward.10} parent=0 // pred_check
    _
  $region7: #{movie_recommendation_forward.10} parent=0 // pred_check_branch
    %11 = sbr.rel (0) target = $region9
  $region8: #{movie_recommendation_forward.10} parent=0 // pred_region
    _
  $region9: #{movie_recommendation_forward.10} parent=0 // pred_fallthru
    _
  // Predicated region
  $region10: #{movie_recommendation_forward.10} parent=0 // pred_check
    _
  $region11: #{movie_recommendation_forward.10} parent=0 // pred_check_branch
    %13 = sbr.rel (0) target = $region13
  $region12: #{movie_recommendation_forward.10} parent=0 // pred_region
    _
  $region13: #{movie_recommendation_forward.10} parent=0 // pred_fallthru
    _
  %v15 = vld [vmem:[%s0] sm:$0xf]
  %v16 = vld [vmem:[%s0 + $0x4] sm:$0xf]
  %v17 = vld [vmem:[%s0 + $0x8] sm:$0xf]
  %v18 = vld [vmem:[%s0 + $0xc] sm:$0xf]
  %v19 = vld [vmem:[%s0 + $0x10] sm:$0xf]
  %v20 = vld [vmem:[%s0 + $0x14] sm:$0xf]
  %v21 = vld [vmem:[%s0 + $0x18] sm:$0xf]
  %v22 = vld [vmem:[%s0 + $0x1c] sm:$0xf]
  %v23 = vld [vmem:[%s0 + $0x20] sm:$0xf]
  %v24 = vld [vmem:[%s0 + $0x24] sm:$0xf]
  %v25 = vld [vmem:[%s0 + $0x28] sm:$0xf]
  %v26 = vld [vmem:[%s0 + $0x2c] sm:$0xf]
  %v27 = vld [vmem:[%s0 + $0x30] sm:$0xf]
  %v28 = vld [vmem:[%s0 + $0x34] sm:$0xf]
  %v29 = vld [vmem:[%s0 + $0x38] sm:$0xf]
  %v30 = vld [vmem:[%s0 + $0x3c] sm:$0xf]
  %v31 = vld [vmem:[%s0 + $0x40] sm:$0xf]
  %v32 = vld [vmem:[%s0 + $0x44] sm:$0xf]
  %v33 = vld [vmem:[%s0 + $0x48] sm:$0xf]
  %v34 = vld [vmem:[%s0 + $0x4c] sm:$0xf]
  %v35 = vld [vmem:[%s0 + $0x50] sm:$0xf]
  %v36 = vld [vmem:[%s0 + $0x54] sm:$0xf]
  %v37 = vld [vmem:[%s0 + $0x58] sm:$0xf]
  %v38 = vld [vmem:[%s0 + $0x5c] sm:$0xf]
  %v39 = vld [vmem:[%s0 + $0x60] sm:$0xf]
  %v40 = vld [vmem:[%s0 + $0x64] sm:$0xf]
  %v41 = vld [vmem:[%s0 + $0x68] sm:$0xf]
  %v42 = vld [vmem:[%s0 + $0x6c] sm:$0xf]
  %v43 = vld [vmem:[%s0 + $0x70] sm:$0xf]
  %v44 = vld [vmem:[%s0 + $0x74] sm:$0xf]
  %v45 = vld [vmem:[%s0 + $0x78] sm:$0xf]
  %v46 = vld [vmem:[%s0 + $0x7c] sm:$0xf]
  %v47 = vld [vmem:[%s1] sm:$0xf]
  %v48 = vld [vmem:[%s1 + $0x4] sm:$0xf]
  %v49 = vld [vmem:[%s1 + $0x8] sm:$0xf]
  %v50 = vld [vmem:[%s1 + $0xc] sm:$0xf]
  %v51 = vld [vmem:[%s1 + $0x10] sm:$0xf]
  %v52 = vld [vmem:[%s1 + $0x14] sm:$0xf]
  %v53 = vld [vmem:[%s1 + $0x18] sm:$0xf]
  %v54 = vld [vmem:[%s1 + $0x1c] sm:$0xf]
  %v55 = vld [vmem:[%s1 + $0x20] sm:$0xf]
  %v56 = vld [vmem:[%s1 + $0x24] sm:$0xf]
  %v57 = vld [vmem:[%s1 + $0x28] sm:$0xf]
  %v58 = vld [vmem:[%s1 + $0x2c] sm:$0xf]
  %v59 = vld [vmem:[%s1 + $0x30] sm:$0xf]
  %v60 = vld [vmem:[%s1 + $0x34] sm:$0xf]
  %v61 = vld [vmem:[%s1 + $0x38] sm:$0xf]
  %v62 = vld [vmem:[%s1 + $0x3c] sm:$0xf]
  %v63 = vld [vmem:[%s2] sm:$0x1]
  %v65 = vlaneseq
  %v66 = vshrl.u32 %v65, 7
  %v67 = vsub.s32 0, %v66
  %v68 = vrot.slane %v63, %v67
  %v102 = vunpack.c.l.b16 %v15
  %v103 = vunpack.c.l.b16 %v16
  %v104 = vunpack.c.l.b16 %v17
  %v105 = vunpack.c.l.b16 %v18
  %v106 = vunpack.c.l.b16 %v19
  %v107 = vunpack.c.l.b16 %v20
  %v108 = vunpack.c.l.b16 %v21
  %v109 = vunpack.c.l.b16 %v22
  %v110 = vunpack.c.l.b16 %v23
  %v111 = vunpack.c.l.b16 %v24
  %v112 = vunpack.c.l.b16 %v25
  %v113 = vunpack.c.l.b16 %v26
  %v114 = vunpack.c.l.b16 %v27
  %v115 = vunpack.c.l.b16 %v28
  %v116 = vunpack.c.l.b16 %v29
  %v117 = vunpack.c.l.b16 %v30
  %v118 = vunpack.c.l.b16 %v31
  %v119 = vunpack.c.l.b16 %v32
  %v120 = vunpack.c.l.b16 %v33
  %v121 = vunpack.c.l.b16 %v34
  %v122 = vunpack.c.l.b16 %v35
  %v123 = vunpack.c.l.b16 %v36
  %v124 = vunpack.c.l.b16 %v37
  %v125 = vunpack.c.l.b16 %v38
  %v126 = vunpack.c.l.b16 %v39
  %v127 = vunpack.c.l.b16 %v40
  %v128 = vunpack.c.l.b16 %v41
  %v129 = vunpack.c.l.b16 %v42
  %v130 = vunpack.c.l.b16 %v43
  %v131 = vunpack.c.l.b16 %v44
  %v132 = vunpack.c.l.b16 %v45
  %v133 = vunpack.c.l.b16 %v46
  %v134 = vpack.c.b16 %v103, %v102
  %v135 = vpack.c.b16 %v105, %v104
  %v136 = vpack.c.b16 %v107, %v106
  %v137 = vpack.c.b16 %v109, %v108
  %v138 = vpack.c.b16 %v111, %v110
  %v139 = vpack.c.b16 %v113, %v112
  %v140 = vpack.c.b16 %v115, %v114
  %v141 = vpack.c.b16 %v117, %v116
  %v142 = vpack.c.b16 %v119, %v118
  %v143 = vpack.c.b16 %v121, %v120
  %v144 = vpack.c.b16 %v123, %v122
  %v145 = vpack.c.b16 %v125, %v124
  %v146 = vpack.c.b16 %v127, %v126
  %v147 = vpack.c.b16 %v129, %v128
  %v148 = vpack.c.b16 %v131, %v130
  %v149 = vpack.c.b16 %v133, %v132
  %v182 = vunpack.c.l.b16 %v47
  %v183 = vunpack.c.l.b16 %v48
  %v184 = vunpack.c.l.b16 %v49
  %v185 = vunpack.c.l.b16 %v50
  %v186 = vunpack.c.l.b16 %v51
  %v187 = vunpack.c.l.b16 %v52
  %v188 = vunpack.c.l.b16 %v53
  %v189 = vunpack.c.l.b16 %v54
  %v190 = vunpack.c.l.b16 %v55
  %v191 = vunpack.c.l.b16 %v56
  %v192 = vunpack.c.l.b16 %v57
  %v193 = vunpack.c.l.b16 %v58
  %v194 = vunpack.c.l.b16 %v59
  %v195 = vunpack.c.l.b16 %v60
  %v196 = vunpack.c.l.b16 %v61
  %v197 = vunpack.c.l.b16 %v62
  %v198 = vpack.c.b16 %v183, %v182
  %v199 = vpack.c.b16 %v185, %v184
  %v200 = vpack.c.b16 %v187, %v186
  %v201 = vpack.c.b16 %v189, %v188
  %v202 = vpack.c.b16 %v191, %v190
  %v203 = vpack.c.b16 %v193, %v192
  %v204 = vpack.c.b16 %v195, %v194
  %v205 = vpack.c.b16 %v197, %v196
  %214 = vmatprep.subr.bf16.mxu0 0
  %215 = vmatpush1.bf16.msra.mxu0 %v198
  %216 = vmatprep.subr.bf16.mxu0 0
  %217 = vmatpush1.bf16.msra.mxu0 %v199
  %218 = vmatprep.subr.bf16.mxu0 0
  %219 = vmatpush1.bf16.msra.mxu0 %v200
  %220 = vmatprep.subr.bf16.mxu0 0
  %221 = vmatpush1.bf16.msra.mxu0 %v201
  %222 = vmatprep.subr.bf16.mxu0 0
  %223 = vmatpush1.bf16.msra.mxu0 %v202
  %224 = vmatprep.subr.bf16.mxu0 0
  %225 = vmatpush1.bf16.msra.mxu0 %v203
  %226 = vmatprep.subr.bf16.mxu0 0
  %227 = vmatpush1.bf16.msra.mxu0 %v204
  %228 = vmatprep.subr.bf16.mxu0 0
  %229 = vmatpush1.bf16.msra.mxu0 %v205
  %230 = vmatprep.subr.bf16.mxu0 0
  %231 = vmatpush1.bf16.msra.mxu0 0
  %232 = vmatprep.subr.bf16.mxu0 0
  %233 = vmatpush1.bf16.msra.mxu0 0
  %234 = vmatprep.subr.bf16.mxu0 0
  %235 = vmatpush1.bf16.msra.mxu0 0
  %236 = vmatprep.subr.bf16.mxu0 0
  %237 = vmatpush1.bf16.msra.mxu0 0
  %238 = vmatprep.subr.bf16.mxu0 0
  %239 = vmatpush1.bf16.msra.mxu0 0
  %240 = vmatprep.subr.bf16.mxu0 0
  %241 = vmatpush1.bf16.msra.mxu0 0
  %242 = vmatprep.subr.bf16.mxu0 0
  %243 = vmatpush1.bf16.msra.mxu0 0
  %244 = vmatprep.subr.bf16.mxu0 0
  %245 = vmatpush1.bf16.msra.mxu0 0
  %246 = vmatprep.mubr.bf16.mxu0 0
  %247 = vmatmul.mubr.bf16.gmra.mrb[0].mxu0 %v134
  %v248 = vpop.f32.mrb[0].mxu0
  %v249 = vadd.f32 %v68, %v248
  %v250 = vpop.f32.mrb[0].mxu0
  %v251 = vpop.f32.mrb[0].mxu0
  %v252 = vadd.f32 %v68, %v251
  %v253 = vpop.f32.mrb[0].mxu0
  %254 = vmatprep.mubr.bf16.mxu0 0
  %255 = vmatmul.mubr.bf16.gmra.mrb[0].mxu0 %v135
  %v256 = vpop.f32.mrb[0].mxu0
  %v257 = vadd.f32 %v68, %v256
  %v258 = vpop.f32.mrb[0].mxu0
  %v259 = vpop.f32.mrb[0].mxu0
  %v260 = vadd.f32 %v68, %v259
  %v261 = vpop.f32.mrb[0].mxu0
  %262 = vmatprep.mubr.bf16.mxu0 0
  %263 = vmatmul.mubr.bf16.gmra.mrb[0].mxu0 %v136
  %v264 = vpop.f32.mrb[0].mxu0
  %v265 = vadd.f32 %v68, %v264
  %v266 = vpop.f32.mrb[0].mxu0
  %v267 = vpop.f32.mrb[0].mxu0
  %v268 = vadd.f32 %v68, %v267
  %v269 = vpop.f32.mrb[0].mxu0
  %270 = vmatprep.mubr.bf16.mxu0 0
  %271 = vmatmul.mubr.bf16.gmra.mrb[0].mxu0 %v137
  %v272 = vpop.f32.mrb[0].mxu0
  %v273 = vadd.f32 %v68, %v272
  %v274 = vpop.f32.mrb[0].mxu0
  %v275 = vpop.f32.mrb[0].mxu0
  %v276 = vadd.f32 %v68, %v275
  %v277 = vpop.f32.mrb[0].mxu0
  %278 = vmatprep.mubr.bf16.mxu0 0
  %279 = vmatmul.mubr.bf16.gmra.mrb[0].mxu0 %v138
  %v280 = vpop.f32.mrb[0].mxu0
  %v281 = vadd.f32 %v68, %v280
  %v282 = vpop.f32.mrb[0].mxu0
  %v283 = vpop.f32.mrb[0].mxu0
  %v284 = vadd.f32 %v68, %v283
  %v285 = vpop.f32.mrb[0].mxu0
  %286 = vmatprep.mubr.bf16.mxu0 0
  %287 = vmatmul.mubr.bf16.gmra.mrb[0].mxu0 %v139
  %v288 = vpop.f32.mrb[0].mxu0
  %v289 = vadd.f32 %v68, %v288
  %v290 = vpop.f32.mrb[0].mxu0
  %v291 = vpop.f32.mrb[0].mxu0
  %v292 = vadd.f32 %v68, %v291
  %v293 = vpop.f32.mrb[0].mxu0
  %294 = vmatprep.mubr.bf16.mxu0 0
  %295 = vmatmul.mubr.bf16.gmra.mrb[0].mxu0 %v140
  %v296 = vpop.f32.mrb[0].mxu0
  %v297 = vadd.f32 %v68, %v296
  %v298 = vpop.f32.mrb[0].mxu0
  %v299 = vpop.f32.mrb[0].mxu0
  %v300 = vadd.f32 %v68, %v299
  %v301 = vpop.f32.mrb[0].mxu0
  %302 = vmatprep.mubr.bf16.mxu0 0
  %303 = vmatmul.mubr.bf16.gmra.mrb[0].mxu0 %v141
  %v304 = vpop.f32.mrb[0].mxu0
  %v305 = vadd.f32 %v68, %v304
  %v306 = vpop.f32.mrb[0].mxu0
  %v307 = vpop.f32.mrb[0].mxu0
  %v308 = vadd.f32 %v68, %v307
  %v309 = vpop.f32.mrb[0].mxu0
  %310 = vmatprep.mubr.bf16.mxu0 0
  %311 = vmatmul.mubr.bf16.gmra.mrb[0].mxu0 %v142
  %v312 = vpop.f32.mrb[0].mxu0
  %v313 = vadd.f32 %v68, %v312
  %v314 = vpop.f32.mrb[0].mxu0
  %v315 = vpop.f32.mrb[0].mxu0
  %v316 = vadd.f32 %v68, %v315
  %v317 = vpop.f32.mrb[0].mxu0
  %318 = vmatprep.mubr.bf16.mxu0 0
  %319 = vmatmul.mubr.bf16.gmra.mrb[0].mxu0 %v143
  %v320 = vpop.f32.mrb[0].mxu0
  %v321 = vadd.f32 %v68, %v320
  %v322 = vpop.f32.mrb[0].mxu0
  %v323 = vpop.f32.mrb[0].mxu0
  %v324 = vadd.f32 %v68, %v323
  %v325 = vpop.f32.mrb[0].mxu0
  %326 = vmatprep.mubr.bf16.mxu0 0
  %327 = vmatmul.mubr.bf16.gmra.mrb[0].mxu0 %v144
  %v328 = vpop.f32.mrb[0].mxu0
  %v329 = vadd.f32 %v68, %v328
  %v330 = vpop.f32.mrb[0].mxu0
  %v331 = vpop.f32.mrb[0].mxu0
  %v332 = vadd.f32 %v68, %v331
  %v333 = vpop.f32.mrb[0].mxu0
  %334 = vmatprep.mubr.bf16.mxu0 0
  %335 = vmatmul.mubr.bf16.gmra.mrb[0].mxu0 %v145
  %v336 = vpop.f32.mrb[0].mxu0
  %v337 = vadd.f32 %v68, %v336
  %v338 = vpop.f32.mrb[0].mxu0
  %v339 = vpop.f32.mrb[0].mxu0
  %v340 = vadd.f32 %v68, %v339
  %v341 = vpop.f32.mrb[0].mxu0
  %342 = vmatprep.mubr.bf16.mxu0 0
  %343 = vmatmul.mubr.bf16.gmra.mrb[0].mxu0 %v146
  %v344 = vpop.f32.mrb[0].mxu0
  %v345 = vadd.f32 %v68, %v344
  %v346 = vpop.f32.mrb[0].mxu0
  %v347 = vpop.f32.mrb[0].mxu0
  %v348 = vadd.f32 %v68, %v347
  %v349 = vpop.f32.mrb[0].mxu0
  %350 = vmatprep.mubr.bf16.mxu0 0
  %351 = vmatmul.mubr.bf16.gmra.mrb[0].mxu0 %v147
  %v352 = vpop.f32.mrb[0].mxu0
  %v353 = vadd.f32 %v68, %v352
  %v354 = vpop.f32.mrb[0].mxu0
  %v355 = vpop.f32.mrb[0].mxu0
  %v356 = vadd.f32 %v68, %v355
  %v357 = vpop.f32.mrb[0].mxu0
  %358 = vmatprep.mubr.bf16.mxu0 0
  %359 = vmatmul.mubr.bf16.gmra.mrb[0].mxu0 %v148
  %v360 = vpop.f32.mrb[0].mxu0
  %v361 = vadd.f32 %v68, %v360
  %v362 = vpop.f32.mrb[0].mxu0
  %v363 = vpop.f32.mrb[0].mxu0
  %v364 = vadd.f32 %v68, %v363
  %v365 = vpop.f32.mrb[0].mxu0
  %366 = vmatprep.mubr.bf16.mxu0 0
  %367 = vmatmul.mubr.bf16.gmra.mrb[0].mxu0 %v149
  %v368 = vpop.f32.mrb[0].mxu0
  %v369 = vadd.f32 %v68, %v368
  %v370 = vpop.f32.mrb[0].mxu0
  %v371 = vpop.f32.mrb[0].mxu0
  %v372 = vadd.f32 %v68, %v371
  %v373 = vpop.f32.mrb[0].mxu0
  %374 = vdwg.mxu0
  %v375 = vmax.f32 %v249, 0.0
  %v376 = vmax.f32 %v252, 0.0
  %v377 = vmax.f32 %v257, 0.0
  %v378 = vmax.f32 %v260, 0.0
  %v379 = vmax.f32 %v265, 0.0
  %v380 = vmax.f32 %v268, 0.0
  %v381 = vmax.f32 %v273, 0.0
  %v382 = vmax.f32 %v276, 0.0
  %v383 = vmax.f32 %v281, 0.0
  %v384 = vmax.f32 %v284, 0.0
  %v385 = vmax.f32 %v289, 0.0
  %v386 = vmax.f32 %v292, 0.0
  %v387 = vmax.f32 %v297, 0.0
  %v388 = vmax.f32 %v300, 0.0
  %v389 = vmax.f32 %v305, 0.0
  %v390 = vmax.f32 %v308, 0.0
  %v391 = vmax.f32 %v313, 0.0
  %v392 = vmax.f32 %v316, 0.0
  %v393 = vmax.f32 %v321, 0.0
  %v394 = vmax.f32 %v324, 0.0
  %v395 = vmax.f32 %v329, 0.0
  %v396 = vmax.f32 %v332, 0.0
  %v397 = vmax.f32 %v337, 0.0
  %v398 = vmax.f32 %v340, 0.0
  %v399 = vmax.f32 %v345, 0.0
  %v400 = vmax.f32 %v348, 0.0
  %v401 = vmax.f32 %v353, 0.0
  %v402 = vmax.f32 %v356, 0.0
  %v403 = vmax.f32 %v361, 0.0
  %v404 = vmax.f32 %v364, 0.0
  %v405 = vmax.f32 %v369, 0.0
  %v406 = vmax.f32 %v372, 0.0
  %v407 = vlaneseq
  %v408 = vand.u32 %v407, 127
  %vm409 = vcmp.lt.s32.totalorder %v408, 16
  %v410 = vsel %vm409, %v375, 0.0
  %v411 = vsel %vm409, %v376, 0.0
  %v412 = vsel %vm409, %v377, 0.0
  %v413 = vsel %vm409, %v378, 0.0
  %v414 = vsel %vm409, %v379, 0.0
  %v415 = vsel %vm409, %v380, 0.0
  %v416 = vsel %vm409, %v381, 0.0
  %v417 = vsel %vm409, %v382, 0.0
  %v418 = vsel %vm409, %v383, 0.0
  %v419 = vsel %vm409, %v384, 0.0
  %v420 = vsel %vm409, %v385, 0.0
  %v421 = vsel %vm409, %v386, 0.0
  %v422 = vsel %vm409, %v387, 0.0
  %v423 = vsel %vm409, %v388, 0.0
  %v424 = vsel %vm409, %v389, 0.0
  %v425 = vsel %vm409, %v390, 0.0
  %v426 = vsel %vm409, %v391, 0.0
  %v427 = vsel %vm409, %v392, 0.0
  %v428 = vsel %vm409, %v393, 0.0
  %v429 = vsel %vm409, %v394, 0.0
  %v430 = vsel %vm409, %v395, 0.0
  %v431 = vsel %vm409, %v396, 0.0
  %v432 = vsel %vm409, %v397, 0.0
  %v433 = vsel %vm409, %v398, 0.0
  %v434 = vsel %vm409, %v399, 0.0
  %v435 = vsel %vm409, %v400, 0.0
  %v436 = vsel %vm409, %v401, 0.0
  %v437 = vsel %vm409, %v402, 0.0
  %v438 = vsel %vm409, %v403, 0.0
  %v439 = vsel %vm409, %v404, 0.0
  %v440 = vsel %vm409, %v405, 0.0
  %v441 = vsel %vm409, %v406, 0.0
  %v442 = vpack.c.bf16 %v411, %v410
  %v443 = vpack.c.bf16 %v413, %v412
  %v444 = vpack.c.bf16 %v415, %v414
  %v445 = vpack.c.bf16 %v417, %v416
  %v446 = vpack.c.bf16 %v419, %v418
  %v447 = vpack.c.bf16 %v421, %v420
  %v448 = vpack.c.bf16 %v423, %v422
  %v449 = vpack.c.bf16 %v425, %v424
  %v450 = vpack.c.bf16 %v427, %v426
  %v451 = vpack.c.bf16 %v429, %v428
  %v452 = vpack.c.bf16 %v431, %v430
  %v453 = vpack.c.bf16 %v433, %v432
  %v454 = vpack.c.bf16 %v435, %v434
  %v455 = vpack.c.bf16 %v437, %v436
  %v456 = vpack.c.bf16 %v439, %v438
  %v457 = vpack.c.bf16 %v441, %v440
  %v474 = vunpack.c.l.b16 %v442
  %v475 = vunpack.c.h.b16 %v442
  %v476 = vunpack.c.l.b16 %v443
  %v477 = vunpack.c.h.b16 %v443
  %v478 = vunpack.c.l.b16 %v444
  %v479 = vunpack.c.h.b16 %v444
  %v480 = vunpack.c.l.b16 %v445
  %v481 = vunpack.c.h.b16 %v445
  %v482 = vunpack.c.l.b16 %v446
  %v483 = vunpack.c.h.b16 %v446
  %v484 = vunpack.c.l.b16 %v447
  %v485 = vunpack.c.h.b16 %v447
  %v486 = vunpack.c.l.b16 %v448
  %v487 = vunpack.c.h.b16 %v448
  %v488 = vunpack.c.l.b16 %v449
  %v489 = vunpack.c.h.b16 %v449
  %v490 = vunpack.c.l.b16 %v450
  %v491 = vunpack.c.h.b16 %v450
  %v492 = vunpack.c.l.b16 %v451
  %v493 = vunpack.c.h.b16 %v451
  %v494 = vunpack.c.l.b16 %v452
  %v495 = vunpack.c.h.b16 %v452
  %v496 = vunpack.c.l.b16 %v453
  %v497 = vunpack.c.h.b16 %v453
  %v498 = vunpack.c.l.b16 %v454
  %v499 = vunpack.c.h.b16 %v454
  %v500 = vunpack.c.l.b16 %v455
  %v501 = vunpack.c.h.b16 %v455
  %v502 = vunpack.c.l.b16 %v456
  %v503 = vunpack.c.h.b16 %v456
  %v504 = vunpack.c.l.b16 %v457
  %v505 = vunpack.c.h.b16 %v457
  %v506 = vpack.c.b16 %v474, %v474
  %v507 = vpack.c.b16 %v475, %v475
  %v508 = vpack.c.b16 %v476, %v476
  %v509 = vpack.c.b16 %v477, %v477
  %v510 = vpack.c.b16 %v478, %v478
  %v511 = vpack.c.b16 %v479, %v479
  %v512 = vpack.c.b16 %v480, %v480
  %v513 = vpack.c.b16 %v481, %v481
  %v514 = vpack.c.b16 %v482, %v482
  %v515 = vpack.c.b16 %v483, %v483
  %v516 = vpack.c.b16 %v484, %v484
  %v517 = vpack.c.b16 %v485, %v485
  %v518 = vpack.c.b16 %v486, %v486
  %v519 = vpack.c.b16 %v487, %v487
  %v520 = vpack.c.b16 %v488, %v488
  %v521 = vpack.c.b16 %v489, %v489
  %v522 = vpack.c.b16 %v490, %v490
  %v523 = vpack.c.b16 %v491, %v491
  %v524 = vpack.c.b16 %v492, %v492
  %v525 = vpack.c.b16 %v493, %v493
  %v526 = vpack.c.b16 %v494, %v494
  %v527 = vpack.c.b16 %v495, %v495
  %v528 = vpack.c.b16 %v496, %v496
  %v529 = vpack.c.b16 %v497, %v497
  %v530 = vpack.c.b16 %v498, %v498
  %v531 = vpack.c.b16 %v499, %v499
  %v532 = vpack.c.b16 %v500, %v500
  %v533 = vpack.c.b16 %v501, %v501
  %v534 = vpack.c.b16 %v502, %v502
  %v535 = vpack.c.b16 %v503, %v503
  %v536 = vpack.c.b16 %v504, %v504
  %v537 = vpack.c.b16 %v505, %v505
  %570 = vst [vmem:[%s3] sm:$0xf] %v506
  %571 = vst [vmem:[%s3 + $0x4] sm:$0xf] %v507
  %572 = vst [vmem:[%s3 + $0x8] sm:$0xf] %v508
  %573 = vst [vmem:[%s3 + $0xc] sm:$0xf] %v509
  %574 = vst [vmem:[%s3 + $0x10] sm:$0xf] %v510
  %575 = vst [vmem:[%s3 + $0x14] sm:$0xf] %v511
  %576 = vst [vmem:[%s3 + $0x18] sm:$0xf] %v512
  %577 = vst [vmem:[%s3 + $0x1c] sm:$0xf] %v513
  %578 = vst [vmem:[%s3 + $0x20] sm:$0xf] %v514
  %579 = vst [vmem:[%s3 + $0x24] sm:$0xf] %v515
  %580 = vst [vmem:[%s3 + $0x28] sm:$0xf] %v516
  %581 = vst [vmem:[%s3 + $0x2c] sm:$0xf] %v517
  %582 = vst [vmem:[%s3 + $0x30] sm:$0xf] %v518
  %583 = vst [vmem:[%s3 + $0x34] sm:$0xf] %v519
  %584 = vst [vmem:[%s3 + $0x38] sm:$0xf] %v520
  %585 = vst [vmem:[%s3 + $0x3c] sm:$0xf] %v521
  %586 = vst [vmem:[%s3 + $0x40] sm:$0xf] %v522
  %587 = vst [vmem:[%s3 + $0x44] sm:$0xf] %v523
  %588 = vst [vmem:[%s3 + $0x48] sm:$0xf] %v524
  %589 = vst [vmem:[%s3 + $0x4c] sm:$0xf] %v525
  %590 = vst [vmem:[%s3 + $0x50] sm:$0xf] %v526
  %591 = vst [vmem:[%s3 + $0x54] sm:$0xf] %v527
  %592 = vst [vmem:[%s3 + $0x58] sm:$0xf] %v528
  %593 = vst [vmem:[%s3 + $0x5c] sm:$0xf] %v529
  %594 = vst [vmem:[%s3 + $0x60] sm:$0xf] %v530
  %595 = vst [vmem:[%s3 + $0x64] sm:$0xf] %v531
  %596 = vst [vmem:[%s3 + $0x68] sm:$0xf] %v532
  %597 = vst [vmem:[%s3 + $0x6c] sm:$0xf] %v533
  %598 = vst [vmem:[%s3 + $0x70] sm:$0xf] %v534
  %599 = vst [vmem:[%s3 + $0x74] sm:$0xf] %v535
  %600 = vst [vmem:[%s3 + $0x78] sm:$0xf] %v536
  %601 = vst [vmem:[%s3 + $0x7c] sm:$0xf] %v537
  // Predicated region
  $region14: #{movie_recommendation_forward.10} parent=0 // pred_check
    _
  $region15: #{movie_recommendation_forward.10} parent=0 // pred_check_branch
    %603 = sbr.rel (0) target = $region17
  $region16: #{movie_recommendation_forward.10} parent=0 // pred_region
    _
  $region17: #{movie_recommendation_forward.10} parent=0 // pred_fallthru
    _
  // Predicated region
  $region18: #{movie_recommendation_forward.10} parent=0 // pred_check
    _
  $region19: #{movie_recommendation_forward.10} parent=0 // pred_check_branch
    %605 = sbr.rel (0) target = $region21
  $region20: #{movie_recommendation_forward.10} parent=0 // pred_region
    _
  $region21: #{movie_recommendation_forward.10} parent=0 // pred_fallthru
    _

// kernel: movie_recommendation_forward.11
$region0: #{movie_recommendation_forward.11}
  #allocation0 [shape = 'u32[]', space=smem, size = 0x4, offset = 0x4, fixed_abs, tag = 'smem constant byte address 0x4 - core index']
  #allocation1 [shape = 'u32[144,128]{1,0:T(1,128)}', space=vmem, size = 0x12000, scoped, tag = 'internal scratch']
  %s0 = inlined_call_operand.vmem [shape: bf16[128,128], index: 0, kind: input, shape index: {}]
  %s1 = inlined_call_operand.vmem [shape: bf16[128,128], index: 1, kind: input, shape index: {}]
  %s2 = inlined_call_operand.vmem [shape: f32[128,128], index: 2, kind: output, shape index: {}]
  %s3 = sld [smem:[#allocation0]]
  $region18: #{movie_recommendation_forward.11} parent=0
    _
  %s5 = ssub.s32 1, %s3
  %s6 = scalar_select 0, %s5, %s3
  // Predicated region
  $region2: #{movie_recommendation_forward.11} parent=0 // pred_check
    _
  $region3: #{movie_recommendation_forward.11} parent=0 // pred_check_branch
    %8 = sbr.rel (0) target = $region5
  $region4: #{movie_recommendation_forward.11} parent=0 // pred_region
    _
  $region5: #{movie_recommendation_forward.11} parent=0 // pred_fallthru
    _
  // Predicated region
  $region6: #{movie_recommendation_forward.11} parent=0 // pred_check
    _
  $region7: #{movie_recommendation_forward.11} parent=0 // pred_check_branch
    %10 = sbr.rel (0) target = $region9
  $region8: #{movie_recommendation_forward.11} parent=0 // pred_region
    _
  $region9: #{movie_recommendation_forward.11} parent=0 // pred_fallthru
    _
  %v12 = vld [vmem:[%s0] sm:$0xf]
  %v13 = vld [vmem:[%s0 + $0x4] sm:$0xf]
  %v14 = vld [vmem:[%s0 + $0x8] sm:$0xf]
  %v15 = vld [vmem:[%s0 + $0xc] sm:$0xf]
  %v16 = vld [vmem:[%s0 + $0x10] sm:$0xf]
  %v17 = vld [vmem:[%s0 + $0x14] sm:$0xf]
  %v18 = vld [vmem:[%s0 + $0x18] sm:$0xf]
  %v19 = vld [vmem:[%s0 + $0x1c] sm:$0xf]
  %v20 = vld [vmem:[%s0 + $0x20] sm:$0xf]
  %v21 = vld [vmem:[%s0 + $0x24] sm:$0xf]
  %v22 = vld [vmem:[%s0 + $0x28] sm:$0xf]
  %v23 = vld [vmem:[%s0 + $0x2c] sm:$0xf]
  %v24 = vld [vmem:[%s0 + $0x30] sm:$0xf]
  %v25 = vld [vmem:[%s0 + $0x34] sm:$0xf]
  %v26 = vld [vmem:[%s0 + $0x38] sm:$0xf]
  %v27 = vld [vmem:[%s0 + $0x3c] sm:$0xf]
  %v28 = vld [vmem:[%s1] sm:$0xf]
  %v29 = vld [vmem:[%s1 + $0x4] sm:$0xf]
  %v30 = vld [vmem:[%s1 + $0x8] sm:$0xf]
  %v31 = vld [vmem:[%s1 + $0xc] sm:$0xf]
  %v32 = vld [vmem:[%s1 + $0x10] sm:$0xf]
  %v33 = vld [vmem:[%s1 + $0x14] sm:$0xf]
  %v34 = vld [vmem:[%s1 + $0x18] sm:$0xf]
  %v35 = vld [vmem:[%s1 + $0x1c] sm:$0xf]
  %v36 = vld [vmem:[%s1 + $0x20] sm:$0xf]
  %v37 = vld [vmem:[%s1 + $0x24] sm:$0xf]
  %v38 = vld [vmem:[%s1 + $0x28] sm:$0xf]
  %v39 = vld [vmem:[%s1 + $0x2c] sm:$0xf]
  %v40 = vld [vmem:[%s1 + $0x30] sm:$0xf]
  %v41 = vld [vmem:[%s1 + $0x34] sm:$0xf]
  %v42 = vld [vmem:[%s1 + $0x38] sm:$0xf]
  %v43 = vld [vmem:[%s1 + $0x3c] sm:$0xf]
  %v60 = vunpack.c.l.b16 %v12
  %v61 = vunpack.c.l.b16 %v13
  %v62 = vunpack.c.l.b16 %v14
  %v63 = vunpack.c.l.b16 %v15
  %v64 = vunpack.c.l.b16 %v16
  %v65 = vunpack.c.l.b16 %v17
  %v66 = vunpack.c.l.b16 %v18
  %v67 = vunpack.c.l.b16 %v19
  %v68 = vunpack.c.l.b16 %v20
  %v69 = vunpack.c.l.b16 %v21
  %v70 = vunpack.c.l.b16 %v22
  %v71 = vunpack.c.l.b16 %v23
  %v72 = vunpack.c.l.b16 %v24
  %v73 = vunpack.c.l.b16 %v25
  %v74 = vunpack.c.l.b16 %v26
  %v75 = vunpack.c.l.b16 %v27
  %v76 = vpack.c.b16 %v61, %v60
  %v77 = vpack.c.b16 %v63, %v62
  %v78 = vpack.c.b16 %v65, %v64
  %v79 = vpack.c.b16 %v67, %v66
  %v80 = vpack.c.b16 %v69, %v68
  %v81 = vpack.c.b16 %v71, %v70
  %v82 = vpack.c.b16 %v73, %v72
  %v83 = vpack.c.b16 %v75, %v74
  %v108 = vunpack.c.l.b16 %v28
  %v109 = vunpack.c.l.b16 %v29
  %v110 = vunpack.c.l.b16 %v30
  %v111 = vunpack.c.l.b16 %v31
  %v112 = vunpack.c.l.b16 %v32
  %v113 = vunpack.c.l.b16 %v33
  %v114 = vunpack.c.l.b16 %v34
  %v115 = vunpack.c.l.b16 %v35
  %v116 = vunpack.c.l.b16 %v36
  %v117 = vunpack.c.l.b16 %v37
  %v118 = vunpack.c.l.b16 %v38
  %v119 = vunpack.c.l.b16 %v39
  %v120 = vunpack.c.l.b16 %v40
  %v121 = vunpack.c.l.b16 %v41
  %v122 = vunpack.c.l.b16 %v42
  %v123 = vunpack.c.l.b16 %v43
  %v124 = vpack.c.b16 %v109, %v108
  %v125 = vpack.c.b16 %v111, %v110
  %v126 = vpack.c.b16 %v113, %v112
  %v127 = vpack.c.b16 %v115, %v114
  %v128 = vpack.c.b16 %v117, %v116
  %v129 = vpack.c.b16 %v119, %v118
  %v130 = vpack.c.b16 %v121, %v120
  %v131 = vpack.c.b16 %v123, %v122
  %140 = vmatprep.subr.bf16.mxu0 0
  %141 = vmatpush1.bf16.xpose.msra.mxu0 %v124
  %142 = vmatprep.subr.bf16.mxu0 0
  %143 = vmatpush1.bf16.xpose.msra.mxu0 %v125
  %144 = vmatprep.subr.bf16.mxu0 0
  %145 = vmatpush1.bf16.xpose.msra.mxu0 %v126
  %146 = vmatprep.subr.bf16.mxu0 0
  %147 = vmatpush1.bf16.xpose.msra.mxu0 %v127
  %148 = vmatprep.subr.bf16.mxu0 0
  %149 = vmatpush1.bf16.xpose.msra.mxu0 %v128
  %150 = vmatprep.subr.bf16.mxu0 0
  %151 = vmatpush1.bf16.xpose.msra.mxu0 %v129
  %152 = vmatprep.subr.bf16.mxu0 0
  %153 = vmatpush1.bf16.xpose.msra.mxu0 %v130
  %154 = vmatprep.subr.bf16.mxu0 0
  %155 = vmatpush1.bf16.xpose.msra.mxu0 %v131
  %156 = vmatprep.subr.bf16.mxu0 0
  %157 = vmatpush1.bf16.xpose.msra.mxu0 0
  %158 = vmatprep.subr.bf16.mxu0 0
  %159 = vmatpush1.bf16.xpose.msra.mxu0 0
  %160 = vmatprep.subr.bf16.mxu0 0
  %161 = vmatpush1.bf16.xpose.msra.mxu0 0
  %162 = vmatprep.subr.bf16.mxu0 0
  %163 = vmatpush1.bf16.xpose.msra.mxu0 0
  %164 = vmatprep.subr.bf16.mxu0 0
  %165 = vmatpush1.bf16.xpose.msra.mxu0 0
  %166 = vmatprep.subr.bf16.mxu0 0
  %167 = vmatpush1.bf16.xpose.msra.mxu0 0
  %168 = vmatprep.subr.bf16.mxu0 0
  %169 = vmatpush1.bf16.xpose.msra.mxu0 0
  %170 = vmatprep.subr.bf16.mxu0 0
  %171 = vmatpush1.bf16.xpose.msra.mxu0 0
  %172 = vmatprep.mubr.bf16.mxu0 0
  %173 = vmatmul.mubr.bf16.gmra.mrb[0].mxu0 %v76
  %v174 = vpop.f32.mrb[0].mxu0
  %v175 = vadd.f32 0.0, %v174
  %v176 = vpop.f32.mrb[0].mxu0
  %v177 = vpop.f32.mrb[0].mxu0
  %v178 = vadd.f32 0.0, %v177
  %v179 = vpop.f32.mrb[0].mxu0
  %180 = vmatprep.mubr.bf16.mxu0 0
  %181 = vmatmul.mubr.bf16.gmra.mrb[0].mxu0 %v77
  %v182 = vpop.f32.mrb[0].mxu0
  %v183 = vadd.f32 0.0, %v182
  %v184 = vpop.f32.mrb[0].mxu0
  %v185 = vpop.f32.mrb[0].mxu0
  %v186 = vadd.f32 0.0, %v185
  %v187 = vpop.f32.mrb[0].mxu0
  %188 = vmatprep.mubr.bf16.mxu0 0
  %189 = vmatmul.mubr.bf16.gmra.mrb[0].mxu0 %v78
  %v190 = vpop.f32.mrb[0].mxu0
  %v191 = vadd.f32 0.0, %v190
  %v192 = vpop.f32.mrb[0].mxu0
  %v193 = vpop.f32.mrb[0].mxu0
  %v194 = vadd.f32 0.0, %v193
  %v195 = vpop.f32.mrb[0].mxu0
  %196 = vmatprep.mubr.bf16.mxu0 0
  %197 = vmatmul.mubr.bf16.gmra.mrb[0].mxu0 %v79
  %v198 = vpop.f32.mrb[0].mxu0
  %v199 = vadd.f32 0.0, %v198
  %v200 = vpop.f32.mrb[0].mxu0
  %v201 = vpop.f32.mrb[0].mxu0
  %v202 = vadd.f32 0.0, %v201
  %v203 = vpop.f32.mrb[0].mxu0
  %204 = vmatprep.mubr.bf16.mxu0 0
  %205 = vmatmul.mubr.bf16.gmra.mrb[0].mxu0 %v80
  %v206 = vpop.f32.mrb[0].mxu0
  %v207 = vadd.f32 0.0, %v206
  %v208 = vpop.f32.mrb[0].mxu0
  %v209 = vpop.f32.mrb[0].mxu0
  %v210 = vadd.f32 0.0, %v209
  %v211 = vpop.f32.mrb[0].mxu0
  %212 = vmatprep.mubr.bf16.mxu0 0
  %213 = vmatmul.mubr.bf16.gmra.mrb[0].mxu0 %v81
  %v214 = vpop.f32.mrb[0].mxu0
  %v215 = vadd.f32 0.0, %v214
  %v216 = vpop.f32.mrb[0].mxu0
  %v217 = vpop.f32.mrb[0].mxu0
  %v218 = vadd.f32 0.0, %v217
  %v219 = vpop.f32.mrb[0].mxu0
  %220 = vmatprep.mubr.bf16.mxu0 0
  %221 = vmatmul.mubr.bf16.gmra.mrb[0].mxu0 %v82
  %v222 = vpop.f32.mrb[0].mxu0
  %v223 = vadd.f32 0.0, %v222
  %v224 = vpop.f32.mrb[0].mxu0
  %v225 = vpop.f32.mrb[0].mxu0
  %v226 = vadd.f32 0.0, %v225
  %v227 = vpop.f32.mrb[0].mxu0
  %228 = vmatprep.mubr.bf16.mxu0 0
  %229 = vmatmul.mubr.bf16.gmra.mrb[0].mxu0 %v83
  %v230 = vpop.f32.mrb[0].mxu0
  %v231 = vadd.f32 0.0, %v230
  %v232 = vpop.f32.mrb[0].mxu0
  %v233 = vpop.f32.mrb[0].mxu0
  %v234 = vadd.f32 0.0, %v233
  %v235 = vpop.f32.mrb[0].mxu0
  %236 = vdwg.mxu0
  %v237 = vmax.f32 %v175, 1.0
  %v238 = vmax.f32 %v178, 1.0
  %v239 = vmax.f32 %v183, 1.0
  %v240 = vmax.f32 %v186, 1.0
  %v241 = vmax.f32 %v191, 1.0
  %v242 = vmax.f32 %v194, 1.0
  %v243 = vmax.f32 %v199, 1.0
  %v244 = vmax.f32 %v202, 1.0
  %v245 = vmax.f32 %v207, 1.0
  %v246 = vmax.f32 %v210, 1.0
  %v247 = vmax.f32 %v215, 1.0
  %v248 = vmax.f32 %v218, 1.0
  %v249 = vmax.f32 %v223, 1.0
  %v250 = vmax.f32 %v226, 1.0
  %v251 = vmax.f32 %v231, 1.0
  %v252 = vmax.f32 %v234, 1.0
  %v253 = vmin.f32 %v237, 5.0
  %v254 = vmin.f32 %v238, 5.0
  %v255 = vmin.f32 %v239, 5.0
  %v256 = vmin.f32 %v240, 5.0
  %v257 = vmin.f32 %v241, 5.0
  %v258 = vmin.f32 %v242, 5.0
  %v259 = vmin.f32 %v243, 5.0
  %v260 = vmin.f32 %v244, 5.0
  %v261 = vmin.f32 %v245, 5.0
  %v262 = vmin.f32 %v246, 5.0
  %v263 = vmin.f32 %v247, 5.0
  %v264 = vmin.f32 %v248, 5.0
  %v265 = vmin.f32 %v249, 5.0
  %v266 = vmin.f32 %v250, 5.0
  %v267 = vmin.f32 %v251, 5.0
  %v268 = vmin.f32 %v252, 5.0
  %269 = vst [vmem:[%s2] sm:$0xff] %v253
  %270 = vst [vmem:[%s2 + $0x8] sm:$0xff] %v254
  %271 = vst [vmem:[%s2 + $0x10] sm:$0xff] %v255
  %272 = vst [vmem:[%s2 + $0x18] sm:$0xff] %v256
  %273 = vst [vmem:[%s2 + $0x20] sm:$0xff] %v257
  %274 = vst [vmem:[%s2 + $0x28] sm:$0xff] %v258
  %275 = vst [vmem:[%s2 + $0x30] sm:$0xff] %v259
  %276 = vst [vmem:[%s2 + $0x38] sm:$0xff] %v260
  %277 = vst [vmem:[%s2 + $0x40] sm:$0xff] %v261
  %278 = vst [vmem:[%s2 + $0x48] sm:$0xff] %v262
  %279 = vst [vmem:[%s2 + $0x50] sm:$0xff] %v263
  %280 = vst [vmem:[%s2 + $0x58] sm:$0xff] %v264
  %281 = vst [vmem:[%s2 + $0x60] sm:$0xff] %v265
  %282 = vst [vmem:[%s2 + $0x68] sm:$0xff] %v266
  %283 = vst [vmem:[%s2 + $0x70] sm:$0xff] %v267
  %284 = vst [vmem:[%s2 + $0x78] sm:$0xff] %v268
  // Predicated region
  $region10: #{movie_recommendation_forward.11} parent=0 // pred_check
    _
  $region11: #{movie_recommendation_forward.11} parent=0 // pred_check_branch
    %286 = sbr.rel (0) target = $region13
  $region12: #{movie_recommendation_forward.11} parent=0 // pred_region
    _
  $region13: #{movie_recommendation_forward.11} parent=0 // pred_fallthru
    _
  // Predicated region
  $region14: #{movie_recommendation_forward.11} parent=0 // pred_check
    _
  $region15: #{movie_recommendation_forward.11} parent=0 // pred_check_branch
    %288 = sbr.rel (0) target = $region17
  $region16: #{movie_recommendation_forward.11} parent=0 // pred_region
    _
  $region17: #{movie_recommendation_forward.11} parent=0 // pred_fallthru
    _

</llo_original>
